<compile_context>
chip_gen: v5e
topology: v5e:2x2
jax: 0.10.0
libtpu: 0.0.40
codegen_flags: <defaults>
</compile_context>

<pallas_src>
import functools

import jax
import jax.numpy as jnp
from jax.experimental import pallas as pl
from jax.experimental.pallas import tpu as pltpu

NEG_SLOPE = 0.2    # LeakyReLU negative slope used throughout the torch module
IN_EPS = 1e-5      # torch.nn.InstanceNorm2d default eps


def _leaky_relu(x):
    return jnp.where(x > 0, x, NEG_SLOPE * x)


# ----------------------------- Pallas kernels ------------------------------ #

def _input_conv_kernel(p_ref, w_ref, b_ref, o_ref, *, N, Ho, Wo, KH, KW, S):
    """Fused first layer: conv(k=4,s=2,p=1) over [image|parents] + bias + LeakyReLU.

    p_ref : [S, S, N, Hp/S, Wp/S, Cin]  f32   stride-phase split of the padded input
    w_ref : [KH, KW, Cin, Cout]         bf16  block-diagonal across image/label chans
    b_ref : [1, Cout]                   f32
    o_ref : [N*Ho*Wo, Cout]             bf16
    im2col happens here: every (kh, kw) tap is a contiguous window of one
    stride-phase plane, flattened to rows (pure tile re-index since Wo % 8 == 0)
    and accumulated straight through the MXU.
    """
    M = N * Ho * Wo
    Cout = o_ref.shape[-1]
    acc = jnp.zeros((M, Cout), jnp.float32)
    for kh in range(KH):
        for kw in range(KW):
            ph, dh = kh % S, kh // S
            pw, dw = kw % S, kw // S
            win = p_ref[ph, pw, :, dh:dh + Ho, dw:dw + Wo, :]      # [N, Ho, Wo, Cin]
            rows = win.reshape(M, -1).astype(jnp.bfloat16)         # one cast per tap
            acc = acc + jnp.dot(rows, w_ref[kh, kw],
                                preferred_element_type=jnp.float32)
    acc = acc + b_ref[...]
    o_ref[...] = _leaky_relu(acc).astype(o_ref.dtype)


def _hidden_tail_kernel(*refs, N, HW, fold, outdim):
    """Fused hidden block: conv (pre-im2col'd patches, no bias) + InstanceNorm
    (affine) + LeakyReLU; optionally folds the final k=4/s=1/p=0 output conv
    when it reduces the remaining spatial extent to 1x1.

    fold=True : refs = (x[M,K], w[K,C], gamma[1,C], beta[1,C],
                        wo[outdim,HW,C], bo[1,outdim], out[N,outdim])
    fold=False: refs = (x[M,K], w[K,C], gamma[1,C], beta[1,C], act[N,HW,C])
    """
    if fold:
        x_ref, w_ref, g_ref, be_ref, wo_ref, bo_ref, out_ref = refs
    else:
        x_ref, w_ref, g_ref, be_ref, act_ref = refs

    C = w_ref.shape[-1]
    z = jnp.dot(x_ref[...], w_ref[...], preferred_element_type=jnp.float32)  # [M, C]
    z = z.reshape(N, HW, C)                       # per-sample split: tile re-index
    mu = jnp.mean(z, axis=1, keepdims=True)                                  # [N,1,C]
    var = jnp.mean(jnp.square(z - mu), axis=1, keepdims=True)   # biased, like torch
    y = (z - mu) * jax.lax.rsqrt(var + IN_EPS)
    y = y * g_ref[...].reshape(1, 1, C) + be_ref[...].reshape(1, 1, C)
    y = _leaky_relu(y)                                                        # [N,HW,C]

    if fold:
        cols = []
        for od in range(outdim):                  # folded output conv = full reduce
            p = y * wo_ref[od][None]                                 # [N, HW, C]
            s = jnp.sum(p, axis=2, keepdims=True)                    # lane reduce
            s = jnp.sum(s, axis=1, keepdims=True)                    # sublane reduce
            cols.append(s.reshape(N, 1))
        res = cols[0] if outdim == 1 else jnp.concatenate(cols, axis=1)
        out_ref[...] = res + bo_ref[...]                             # [N, outdim] f32
    else:
        act_ref[...] = y.astype(act_ref.dtype)


def _matmul_bias_kernel(x_ref, w_ref, b_ref, o_ref):
    """Fallback conv-as-matmul (+bias, no act) for configs where the output conv
    cannot be folded into the last hidden block (not hit by the demo config)."""
    acc = jnp.dot(x_ref[...], w_ref[...], preferred_element_type=jnp.float32)
    o_ref[...] = acc + b_ref[...]


# ------------------------------ wrappers ----------------------------------- #

def _phase_split(x_nhwc, padding, stride):
    """Pad and split into stride phases: out[ph,pw,n,r,s,c] = xpad[n, r*S+ph, s*S+pw, c].

    One pass over 1x the activation bytes (vs. the 16x im2col slab)."""
    N, H, W, C = x_nhwc.shape
    xp = jnp.pad(x_nhwc, ((0, 0), (padding, padding), (padding, padding), (0, 0)))
    Hp, Wp = H + 2 * padding, W + 2 * padding
    assert Hp % stride == 0 and Wp % stride == 0
    xp = xp.reshape(N, Hp // stride, stride, Wp // stride, stride, C)
    return jnp.transpose(xp, (2, 4, 0, 1, 3, 5))        # [S, S, N, Hp/S, Wp/S, C]


def _im2col(x_nhwc, KH, KW, stride, padding):
    """XLA-side im2col; only used for the tiny tail layers where the patch slab
    is a few KB and the spatial extent is too small for the in-kernel path."""
    N, H, W, C = x_nhwc.shape
    Ho = (H + 2 * padding - KH) // stride + 1
    Wo = (W + 2 * padding - KW) // stride + 1
    xp = jnp.pad(x_nhwc, ((0, 0), (padding, padding), (padding, padding), (0, 0)))
    cols = [xp[:, kh:kh + stride * Ho:stride, kw:kw + stride * Wo:stride, :]
            for kh in range(KH) for kw in range(KW)]
    patches = jnp.concatenate(cols, axis=-1)             # [N, Ho, Wo, KH*KW*C]
    return patches.reshape(N * Ho * Wo, KH * KW * C), Ho, Wo


def fused_input_conv_pallas(x_nhwc, w_hwio, bias):
    """First layer (both input convs at once): k=4, s=2, p=1 conv + bias + LeakyReLU
    with in-kernel im2col (stride-phase gather).  Activation output in bf16."""
    N, H, W, _ = x_nhwc.shape
    KH, KW, _, Cout = w_hwio.shape
    s, p = 2, 1
    Ho = (H + 2 * p - KH) // s + 1
    Wo = (W + 2 * p - KW) // s + 1
    assert Wo % 8 == 0, "in-kernel row flatten requires sublane-aligned Wo"
    P = _phase_split(x_nhwc, p, s).astype(jnp.float32)
    out = pl.pallas_call(
        functools.partial(_input_conv_kernel, N=N, Ho=Ho, Wo=Wo, KH=KH, KW=KW, S=s),
        out_shape=jax.ShapeDtypeStruct((N * Ho * Wo, Cout), jnp.bfloat16),
        in_specs=[pl.BlockSpec(memory_space=pltpu.MemorySpace.VMEM)] * 3,
        out_specs=pl.BlockSpec(memory_space=pltpu.MemorySpace.VMEM),
    )(P, w_hwio.astype(jnp.bfloat16), bias.reshape(1, Cout).astype(jnp.float32))
    return out.reshape(N, Ho, Wo, Cout)


def hidden_block_pallas(x_nhwc, w_hwio, gamma, beta, fold_w=None, fold_b=None):
    """One hidden block: conv(k=4,s=2,p=1, bias=False) + InstanceNorm(affine) +
    LeakyReLU fused in a single pallas_call.  If fold_w/fold_b are given (and the
    block's output spatial extent equals the output conv kernel) the final conv
    is folded in and the call returns the [N, output_dim] logits directly."""
    N = x_nhwc.shape[0]
    KH, KW, Cin, Cout = w_hwio.shape
    patches, Ho, Wo = _im2col(x_nhwc, KH, KW, 2, 1)
    HW = Ho * Wo
    pm = patches.astype(jnp.bfloat16)
    wm = w_hwio.reshape(KH * KW * Cin, Cout).astype(jnp.bfloat16)
    g = gamma.reshape(1, Cout).astype(jnp.float32)
    b = beta.reshape(1, Cout).astype(jnp.float32)

    if fold_w is not None:
        outdim = fold_w.shape[-1]
        assert fold_w.shape[0] * fold_w.shape[1] == HW
        wo = jnp.transpose(fold_w, (3, 0, 1, 2)).reshape(outdim, HW, Cout)
        wo = wo.astype(jnp.float32)                      # epilogue math stays f32
        bo = fold_b.reshape(1, outdim).astype(jnp.float32)
        return pl.pallas_call(
            functools.partial(_hidden_tail_kernel, N=N, HW=HW, fold=True, outdim=outdim),
            out_shape=jax.ShapeDtypeStruct((N, outdim), jnp.float32),
            in_specs=[pl.BlockSpec(memory_space=pltpu.MemorySpace.VMEM)] * 6,
            out_specs=pl.BlockSpec(memory_space=pltpu.MemorySpace.VMEM),
        )(pm, wm, g, b, wo, bo)                          # [N, outdim]

    act = pl.pallas_call(
        functools.partial(_hidden_tail_kernel, N=N, HW=HW, fold=False, outdim=0),
        out_shape=jax.ShapeDtypeStruct((N, HW, Cout), jnp.bfloat16),
        in_specs=[pl.BlockSpec(memory_space=pltpu.MemorySpace.VMEM)] * 4,
        out_specs=pl.BlockSpec(memory_space=pltpu.MemorySpace.VMEM),
    )(pm, wm, g, b)
    return act.reshape(N, Ho, Wo, Cout)


def conv_bias_pallas(x_nhwc, w_hwio, bias, *, stride, padding):
    """Fallback output conv (+bias) as a single matmul kernel."""
    N = x_nhwc.shape[0]
    KH, KW, Cin, Cout = w_hwio.shape
    patches, Ho, Wo = _im2col(x_nhwc, KH, KW, stride, padding)
    out = pl.pallas_call(
        _matmul_bias_kernel,
        out_shape=jax.ShapeDtypeStruct((N * Ho * Wo, Cout), jnp.float32),
        in_specs=[pl.BlockSpec(memory_space=pltpu.MemorySpace.VMEM)] * 3,
        out_specs=pl.BlockSpec(memory_space=pltpu.MemorySpace.VMEM),
    )(patches.astype(jnp.bfloat16),
      w_hwio.reshape(KH * KW * Cin, Cout).astype(jnp.bfloat16),
      bias.reshape(1, Cout).astype(jnp.float32))
    return out.reshape(N, Ho, Wo, Cout)


# --------------------------- parameters & model ----------------------------- #

def init_params(key, image_dim, label_dims, num_filters, output_dim):
    ks = iter(jax.random.split(key, 4 + 3 * len(num_filters) + 2))
    half = num_filters[0] // 2

    def conv_w(k, cin, cout, kh=4, kw=4, scale=0.05):
        return scale * jax.random.normal(k, (kh, kw, cin, cout), jnp.float32)

    params = {
        "input_conv_w": conv_w(next(ks), image_dim, half),
        "input_conv_b": 0.05 * jax.random.normal(next(ks), (half,), jnp.float32),
        "label_conv_w": conv_w(next(ks), label_dims, half),
        "label_conv_b": 0.05 * jax.random.normal(next(ks), (half,), jnp.float32),
        "hidden": [],
    }
    for i in range(1, len(num_filters)):
        cw = conv_w(next(ks), num_filters[i - 1], num_filters[i])        # bias=False
        gamma = 1.0 + 0.05 * jax.random.normal(next(ks), (num_filters[i],), jnp.float32)
        beta = 0.05 * jax.random.normal(next(ks), (num_filters[i],), jnp.float32)
        params["hidden"].append((cw, gamma, beta))
    params["out_w"] = conv_w(next(ks), num_filters[-1], output_dim)
    params["out_b"] = 0.05 * jax.random.normal(next(ks), (output_dim,), jnp.float32)
    return params


def digit_image_discriminator_forward(params, image_nchw, parents_nchw):
    """Matches DigitImageDiscriminator.forward(image, parents).  I/O in NCHW."""
    img = jnp.transpose(image_nchw, (0, 2, 3, 1))        # -> NHWC (C on lanes)
    par = jnp.transpose(parents_nchw, (0, 2, 3, 1))
    x0 = jnp.concatenate([img, par], axis=-1)

    # Fuse the two first-layer convs into one kernel via a block-diagonal
    # weight: out[..., :half] only sees image channels, out[..., half:] only
    # sees parent channels -> identical math, one launch, torch.cat for free.
    wi, wl = params["input_conv_w"], params["label_conv_w"]
    Ci, Cl = wi.shape[2], wl.shape[2]
    half = wi.shape[3]
    w1 = jnp.zeros((wi.shape[0], wi.shape[1], Ci + Cl, 2 * half), jnp.float32)
    w1 = w1.at[:, :, :Ci, :half].set(wi)
    w1 = w1.at[:, :, Ci:, half:].set(wl)
    b1 = jnp.concatenate([params["input_conv_b"], params["label_conv_b"]])
    x = fused_input_conv_pallas(x0, w1, b1)

    hidden = params["hidden"]
    out_w, out_b = params["out_w"], params["out_b"]
    for li, (cw, gamma, beta) in enumerate(hidden):
        ho = (x.shape[1] + 2 - 4) // 2 + 1
        wo = (x.shape[2] + 2 - 4) // 2 + 1
        can_fold = (li == len(hidden) - 1
                    and ho == out_w.shape[0] and wo == out_w.shape[1])
        if can_fold:
            logits = hidden_block_pallas(x, cw, gamma, beta,
                                         fold_w=out_w, fold_b=out_b)     # [N, outdim]
            return logits.reshape(logits.shape[0], logits.shape[1], 1, 1)  # NCHW
        x = hidden_block_pallas(x, cw, gamma, beta)

    # Output conv could not be folded (non-1x1 output): fallback kernel.
    out = conv_bias_pallas(x, out_w, out_b, stride=1, padding=0)
    return jnp.transpose(out, (0, 3, 1, 2))


# --------------------------- pure-JAX reference ----------------------------- #

def _ref_forward(params, image_nchw, parents_nchw):
    def conv(x, w, b, stride, padding, cast=True):
        if cast:   # mirror the kernels' bf16 MXU operands (f32 accumulation)
            x = x.astype(jnp.bfloat16)
            w = w.astype(jnp.bfloat16)
        y = jax.lax.conv_general_dilated(
            x, w, window_strides=(stride, stride),
            padding=[(padding, padding), (padding, padding)],
            dimension_numbers=("NHWC", "HWIO", "NHWC"),
            preferred_element_type=jnp.float32)
        return y if b is None else y + b

    lrelu = lambda v: jnp.where(v > 0, v, NEG_SLOPE * v)
    img = jnp.transpose(image_nchw, (0, 2, 3, 1))
    par = jnp.transpose(parents_nchw, (0, 2, 3, 1))
    h1 = lrelu(conv(img, params["input_conv_w"], params["input_conv_b"], 2, 1))
    h2 = lrelu(conv(par, params["label_conv_w"], params["label_conv_b"], 2, 1))
    x = jnp.concatenate([h1, h2], axis=-1)
    for (cw, gamma, beta) in params["hidden"]:
        x = conv(x, cw, None, 2, 1)
        mean = jnp.mean(x, axis=(1, 2), keepdims=True)
        var = jnp.mean((x - mean) ** 2, axis=(1, 2), keepdims=True)
        x = (x - mean) * jax.lax.rsqrt(var + IN_EPS)
        x = lrelu(x * gamma + beta)
    out = conv(x, params["out_w"], params["out_b"], 1, 0, cast=False)  # folded tail is f32
    return jnp.transpose(out, (0, 3, 1, 2))


# ---------------------------------- main ------------------------------------ #

if __name__ == "__main__":
    # Small config consistent with the module: 16x16 "digit" images.
    N, image_dim, label_dims = 2, 3, 2
    num_filters = [16, 32]
    output_dim = 1
    H = W = 16

    key = jax.random.PRNGKey(0)
    kp, ki, kl = jax.random.split(key, 3)
    params = init_params(kp, image_dim, label_dims, num_filters, output_dim)
    image = jax.random.normal(ki, (N, image_dim, H, W), jnp.float32)
    parents = jax.random.normal(kl, (N, label_dims, H, W), jnp.float32)

    fwd = jax.jit(digit_image_discriminator_forward)
    out = jax.block_until_ready(fwd(params, image, parents))

    assert out.shape == (N, output_dim, 1, 1), out.shape
    ref = jax.block_until_ready(jax.jit(_ref_forward)(params, image, parents))
    assert jnp.allclose(out, ref, atol=5e-3, rtol=5e-3), (out, ref)
    print("KERNEL_OK")
</pallas_src>

<mosaic_0001>
module attributes {stable_mosaic.version = 11 : i64} {
  func.func @_input_conv_kernel(%arg0: memref<2x2x2x9x9x5xf32, #tpu.memory_space<vmem>>, %arg1: memref<4x4x5x16xbf16, #tpu.memory_space<vmem>>, %arg2: memref<1x16xf32, #tpu.memory_space<vmem>>, %arg3: memref<128x16xbf16, #tpu.memory_space<vmem>>) attributes {dimension_semantics = [], scalar_prefetch = 0 : i64, scratch_operands = 0 : i64, tpu.core_type = #tpu.core_type<tc>} {
    %cst = arith.constant 0.000000e+00 : f32
    %0 = vector.broadcast %cst : f32 to vector<128x16xf32>
    %c0 = arith.constant 0 : index
    %c0_0 = arith.constant 0 : index
    %c0_1 = arith.constant 0 : index
    %c0_2 = arith.constant 0 : index
    %c0_3 = arith.constant 0 : index
    %c0_4 = arith.constant 0 : index
    %1 = vector.load %arg0[%c0, %c0_0, %c0_1, %c0_2, %c0_3, %c0_4] : memref<2x2x2x9x9x5xf32, #tpu.memory_space<vmem>>, vector<1x1x2x8x8x5xf32>
    %2 = vector.shape_cast %1 : vector<1x1x2x8x8x5xf32> to vector<2x8x8x5xf32>
    %3 = vector.shape_cast %2 : vector<2x8x8x5xf32> to vector<128x5xf32>
    %4 = arith.truncf %3 : vector<128x5xf32> to vector<128x5xbf16>
    %c0_5 = arith.constant 0 : index
    %c0_6 = arith.constant 0 : index
    %c0_7 = arith.constant 0 : index
    %c0_8 = arith.constant 0 : index
    %5 = vector.load %arg1[%c0_5, %c0_6, %c0_7, %c0_8] : memref<4x4x5x16xbf16, #tpu.memory_space<vmem>>, vector<1x1x5x16xbf16>
    %6 = vector.shape_cast %5 : vector<1x1x5x16xbf16> to vector<5x16xbf16>
    %cst_9 = arith.constant dense<0.000000e+00> : vector<128x16xf32>
    %7 = tpu.matmul %4, %6, %cst_9 {dimension_numbers = #tpu.dot_dimension_numbers<[1], [0], [0], [1], [0, 0, 1, 1], [], []>} : vector<128x5xbf16>, vector<5x16xbf16>, vector<128x16xf32> -> vector<128x16xf32>
    %8 = arith.addf %0, %7 : vector<128x16xf32>
    %c0_10 = arith.constant 0 : index
    %c1 = arith.constant 1 : index
    %c0_11 = arith.constant 0 : index
    %c0_12 = arith.constant 0 : index
    %c0_13 = arith.constant 0 : index
    %c0_14 = arith.constant 0 : index
    %9 = vector.load %arg0[%c0_10, %c1, %c0_11, %c0_12, %c0_13, %c0_14] : memref<2x2x2x9x9x5xf32, #tpu.memory_space<vmem>>, vector<1x1x2x8x8x5xf32>
    %10 = vector.shape_cast %9 : vector<1x1x2x8x8x5xf32> to vector<2x8x8x5xf32>
    %11 = vector.shape_cast %10 : vector<2x8x8x5xf32> to vector<128x5xf32>
    %12 = arith.truncf %11 : vector<128x5xf32> to vector<128x5xbf16>
    %c0_15 = arith.constant 0 : index
    %c1_16 = arith.constant 1 : index
    %c0_17 = arith.constant 0 : index
    %c0_18 = arith.constant 0 : index
    %13 = vector.load %arg1[%c0_15, %c1_16, %c0_17, %c0_18] : memref<4x4x5x16xbf16, #tpu.memory_space<vmem>>, vector<1x1x5x16xbf16>
    %14 = vector.shape_cast %13 : vector<1x1x5x16xbf16> to vector<5x16xbf16>
    %cst_19 = arith.constant dense<0.000000e+00> : vector<128x16xf32>
    %15 = tpu.matmul %12, %14, %cst_19 {dimension_numbers = #tpu.dot_dimension_numbers<[1], [0], [0], [1], [0, 0, 1, 1], [], []>} : vector<128x5xbf16>, vector<5x16xbf16>, vector<128x16xf32> -> vector<128x16xf32>
    %16 = arith.addf %8, %15 : vector<128x16xf32>
    %c0_20 = arith.constant 0 : index
    %c0_21 = arith.constant 0 : index
    %c0_22 = arith.constant 0 : index
    %c0_23 = arith.constant 0 : index
    %c1_24 = arith.constant 1 : index
    %c0_25 = arith.constant 0 : index
    %17 = vector.load %arg0[%c0_20, %c0_21, %c0_22, %c0_23, %c1_24, %c0_25] : memref<2x2x2x9x9x5xf32, #tpu.memory_space<vmem>>, vector<1x1x2x8x8x5xf32>
    %18 = vector.shape_cast %17 : vector<1x1x2x8x8x5xf32> to vector<2x8x8x5xf32>
    %19 = vector.shape_cast %18 : vector<2x8x8x5xf32> to vector<128x5xf32>
    %20 = arith.truncf %19 : vector<128x5xf32> to vector<128x5xbf16>
    %c0_26 = arith.constant 0 : index
    %c2 = arith.constant 2 : index
    %c0_27 = arith.constant 0 : index
    %c0_28 = arith.constant 0 : index
    %21 = vector.load %arg1[%c0_26, %c2, %c0_27, %c0_28] : memref<4x4x5x16xbf16, #tpu.memory_space<vmem>>, vector<1x1x5x16xbf16>
    %22 = vector.shape_cast %21 : vector<1x1x5x16xbf16> to vector<5x16xbf16>
    %cst_29 = arith.constant dense<0.000000e+00> : vector<128x16xf32>
    %23 = tpu.matmul %20, %22, %cst_29 {dimension_numbers = #tpu.dot_dimension_numbers<[1], [0], [0], [1], [0, 0, 1, 1], [], []>} : vector<128x5xbf16>, vector<5x16xbf16>, vector<128x16xf32> -> vector<128x16xf32>
    %24 = arith.addf %16, %23 : vector<128x16xf32>
    %c0_30 = arith.constant 0 : index
    %c1_31 = arith.constant 1 : index
    %c0_32 = arith.constant 0 : index
    %c0_33 = arith.constant 0 : index
    %c1_34 = arith.constant 1 : index
    %c0_35 = arith.constant 0 : index
    %25 = vector.load %arg0[%c0_30, %c1_31, %c0_32, %c0_33, %c1_34, %c0_35] : memref<2x2x2x9x9x5xf32, #tpu.memory_space<vmem>>, vector<1x1x2x8x8x5xf32>
    %26 = vector.shape_cast %25 : vector<1x1x2x8x8x5xf32> to vector<2x8x8x5xf32>
    %27 = vector.shape_cast %26 : vector<2x8x8x5xf32> to vector<128x5xf32>
    %28 = arith.truncf %27 : vector<128x5xf32> to vector<128x5xbf16>
    %c0_36 = arith.constant 0 : index
    %c3 = arith.constant 3 : index
    %c0_37 = arith.constant 0 : index
    %c0_38 = arith.constant 0 : index
    %29 = vector.load %arg1[%c0_36, %c3, %c0_37, %c0_38] : memref<4x4x5x16xbf16, #tpu.memory_space<vmem>>, vector<1x1x5x16xbf16>
    %30 = vector.shape_cast %29 : vector<1x1x5x16xbf16> to vector<5x16xbf16>
    %cst_39 = arith.constant dense<0.000000e+00> : vector<128x16xf32>
    %31 = tpu.matmul %28, %30, %cst_39 {dimension_numbers = #tpu.dot_dimension_numbers<[1], [0], [0], [1], [0, 0, 1, 1], [], []>} : vector<128x5xbf16>, vector<5x16xbf16>, vector<128x16xf32> -> vector<128x16xf32>
    %32 = arith.addf %24, %31 : vector<128x16xf32>
    %c1_40 = arith.constant 1 : index
    %c0_41 = arith.constant 0 : index
    %c0_42 = arith.constant 0 : index
    %c0_43 = arith.constant 0 : index
    %c0_44 = arith.constant 0 : index
    %c0_45 = arith.constant 0 : index
    %33 = vector.load %arg0[%c1_40, %c0_41, %c0_42, %c0_43, %c0_44, %c0_45] : memref<2x2x2x9x9x5xf32, #tpu.memory_space<vmem>>, vector<1x1x2x8x8x5xf32>
    %34 = vector.shape_cast %33 : vector<1x1x2x8x8x5xf32> to vector<2x8x8x5xf32>
    %35 = vector.shape_cast %34 : vector<2x8x8x5xf32> to vector<128x5xf32>
    %36 = arith.truncf %35 : vector<128x5xf32> to vector<128x5xbf16>
    %c1_46 = arith.constant 1 : index
    %c0_47 = arith.constant 0 : index
    %c0_48 = arith.constant 0 : index
    %c0_49 = arith.constant 0 : index
    %37 = vector.load %arg1[%c1_46, %c0_47, %c0_48, %c0_49] : memref<4x4x5x16xbf16, #tpu.memory_space<vmem>>, vector<1x1x5x16xbf16>
    %38 = vector.shape_cast %37 : vector<1x1x5x16xbf16> to vector<5x16xbf16>
    %cst_50 = arith.constant dense<0.000000e+00> : vector<128x16xf32>
    %39 = tpu.matmul %36, %38, %cst_50 {dimension_numbers = #tpu.dot_dimension_numbers<[1], [0], [0], [1], [0, 0, 1, 1], [], []>} : vector<128x5xbf16>, vector<5x16xbf16>, vector<128x16xf32> -> vector<128x16xf32>
    %40 = arith.addf %32, %39 : vector<128x16xf32>
    %c1_51 = arith.constant 1 : index
    %c1_52 = arith.constant 1 : index
    %c0_53 = arith.constant 0 : index
    %c0_54 = arith.constant 0 : index
    %c0_55 = arith.constant 0 : index
    %c0_56 = arith.constant 0 : index
    %41 = vector.load %arg0[%c1_51, %c1_52, %c0_53, %c0_54, %c0_55, %c0_56] : memref<2x2x2x9x9x5xf32, #tpu.memory_space<vmem>>, vector<1x1x2x8x8x5xf32>
    %42 = vector.shape_cast %41 : vector<1x1x2x8x8x5xf32> to vector<2x8x8x5xf32>
    %43 = vector.shape_cast %42 : vector<2x8x8x5xf32> to vector<128x5xf32>
    %44 = arith.truncf %43 : vector<128x5xf32> to vector<128x5xbf16>
    %c1_57 = arith.constant 1 : index
    %c1_58 = arith.constant 1 : index
    %c0_59 = arith.constant 0 : index
    %c0_60 = arith.constant 0 : index
    %45 = vector.load %arg1[%c1_57, %c1_58, %c0_59, %c0_60] : memref<4x4x5x16xbf16, #tpu.memory_space<vmem>>, vector<1x1x5x16xbf16>
    %46 = vector.shape_cast %45 : vector<1x1x5x16xbf16> to vector<5x16xbf16>
    %cst_61 = arith.constant dense<0.000000e+00> : vector<128x16xf32>
    %47 = tpu.matmul %44, %46, %cst_61 {dimension_numbers = #tpu.dot_dimension_numbers<[1], [0], [0], [1], [0, 0, 1, 1], [], []>} : vector<128x5xbf16>, vector<5x16xbf16>, vector<128x16xf32> -> vector<128x16xf32>
    %48 = arith.addf %40, %47 : vector<128x16xf32>
    %c1_62 = arith.constant 1 : index
    %c0_63 = arith.constant 0 : index
    %c0_64 = arith.constant 0 : index
    %c0_65 = arith.constant 0 : index
    %c1_66 = arith.constant 1 : index
    %c0_67 = arith.constant 0 : index
    %49 = vector.load %arg0[%c1_62, %c0_63, %c0_64, %c0_65, %c1_66, %c0_67] : memref<2x2x2x9x9x5xf32, #tpu.memory_space<vmem>>, vector<1x1x2x8x8x5xf32>
    %50 = vector.shape_cast %49 : vector<1x1x2x8x8x5xf32> to vector<2x8x8x5xf32>
    %51 = vector.shape_cast %50 : vector<2x8x8x5xf32> to vector<128x5xf32>
    %52 = arith.truncf %51 : vector<128x5xf32> to vector<128x5xbf16>
    %c1_68 = arith.constant 1 : index
    %c2_69 = arith.constant 2 : index
    %c0_70 = arith.constant 0 : index
    %c0_71 = arith.constant 0 : index
    %53 = vector.load %arg1[%c1_68, %c2_69, %c0_70, %c0_71] : memref<4x4x5x16xbf16, #tpu.memory_space<vmem>>, vector<1x1x5x16xbf16>
    %54 = vector.shape_cast %53 : vector<1x1x5x16xbf16> to vector<5x16xbf16>
    %cst_72 = arith.constant dense<0.000000e+00> : vector<128x16xf32>
    %55 = tpu.matmul %52, %54, %cst_72 {dimension_numbers = #tpu.dot_dimension_numbers<[1], [0], [0], [1], [0, 0, 1, 1], [], []>} : vector<128x5xbf16>, vector<5x16xbf16>, vector<128x16xf32> -> vector<128x16xf32>
    %56 = arith.addf %48, %55 : vector<128x16xf32>
    %c1_73 = arith.constant 1 : index
    %c1_74 = arith.constant 1 : index
    %c0_75 = arith.constant 0 : index
    %c0_76 = arith.constant 0 : index
    %c1_77 = arith.constant 1 : index
    %c0_78 = arith.constant 0 : index
    %57 = vector.load %arg0[%c1_73, %c1_74, %c0_75, %c0_76, %c1_77, %c0_78] : memref<2x2x2x9x9x5xf32, #tpu.memory_space<vmem>>, vector<1x1x2x8x8x5xf32>
    %58 = vector.shape_cast %57 : vector<1x1x2x8x8x5xf32> to vector<2x8x8x5xf32>
    %59 = vector.shape_cast %58 : vector<2x8x8x5xf32> to vector<128x5xf32>
    %60 = arith.truncf %59 : vector<128x5xf32> to vector<128x5xbf16>
    %c1_79 = arith.constant 1 : index
    %c3_80 = arith.constant 3 : index
    %c0_81 = arith.constant 0 : index
    %c0_82 = arith.constant 0 : index
    %61 = vector.load %arg1[%c1_79, %c3_80, %c0_81, %c0_82] : memref<4x4x5x16xbf16, #tpu.memory_space<vmem>>, vector<1x1x5x16xbf16>
    %62 = vector.shape_cast %61 : vector<1x1x5x16xbf16> to vector<5x16xbf16>
    %cst_83 = arith.constant dense<0.000000e+00> : vector<128x16xf32>
    %63 = tpu.matmul %60, %62, %cst_83 {dimension_numbers = #tpu.dot_dimension_numbers<[1], [0], [0], [1], [0, 0, 1, 1], [], []>} : vector<128x5xbf16>, vector<5x16xbf16>, vector<128x16xf32> -> vector<128x16xf32>
    %64 = arith.addf %56, %63 : vector<128x16xf32>
    %c0_84 = arith.constant 0 : index
    %c0_85 = arith.constant 0 : index
    %c0_86 = arith.constant 0 : index
    %c1_87 = arith.constant 1 : index
    %c0_88 = arith.constant 0 : index
    %c0_89 = arith.constant 0 : index
    %65 = vector.load %arg0[%c0_84, %c0_85, %c0_86, %c1_87, %c0_88, %c0_89] : memref<2x2x2x9x9x5xf32, #tpu.memory_space<vmem>>, vector<1x1x2x8x8x5xf32>
    %66 = vector.shape_cast %65 : vector<1x1x2x8x8x5xf32> to vector<2x8x8x5xf32>
    %67 = vector.shape_cast %66 : vector<2x8x8x5xf32> to vector<128x5xf32>
    %68 = arith.truncf %67 : vector<128x5xf32> to vector<128x5xbf16>
    %c2_90 = arith.constant 2 : index
    %c0_91 = arith.constant 0 : index
    %c0_92 = arith.constant 0 : index
    %c0_93 = arith.constant 0 : index
    %69 = vector.load %arg1[%c2_90, %c0_91, %c0_92, %c0_93] : memref<4x4x5x16xbf16, #tpu.memory_space<vmem>>, vector<1x1x5x16xbf16>
    %70 = vector.shape_cast %69 : vector<1x1x5x16xbf16> to vector<5x16xbf16>
    %cst_94 = arith.constant dense<0.000000e+00> : vector<128x16xf32>
    %71 = tpu.matmul %68, %70, %cst_94 {dimension_numbers = #tpu.dot_dimension_numbers<[1], [0], [0], [1], [0, 0, 1, 1], [], []>} : vector<128x5xbf16>, vector<5x16xbf16>, vector<128x16xf32> -> vector<128x16xf32>
    %72 = arith.addf %64, %71 : vector<128x16xf32>
    %c0_95 = arith.constant 0 : index
    %c1_96 = arith.constant 1 : index
    %c0_97 = arith.constant 0 : index
    %c1_98 = arith.constant 1 : index
    %c0_99 = arith.constant 0 : index
    %c0_100 = arith.constant 0 : index
    %73 = vector.load %arg0[%c0_95, %c1_96, %c0_97, %c1_98, %c0_99, %c0_100] : memref<2x2x2x9x9x5xf32, #tpu.memory_space<vmem>>, vector<1x1x2x8x8x5xf32>
    %74 = vector.shape_cast %73 : vector<1x1x2x8x8x5xf32> to vector<2x8x8x5xf32>
    %75 = vector.shape_cast %74 : vector<2x8x8x5xf32> to vector<128x5xf32>
    %76 = arith.truncf %75 : vector<128x5xf32> to vector<128x5xbf16>
    %c2_101 = arith.constant 2 : index
    %c1_102 = arith.constant 1 : index
    %c0_103 = arith.constant 0 : index
    %c0_104 = arith.constant 0 : index
    %77 = vector.load %arg1[%c2_101, %c1_102, %c0_103, %c0_104] : memref<4x4x5x16xbf16, #tpu.memory_space<vmem>>, vector<1x1x5x16xbf16>
    %78 = vector.shape_cast %77 : vector<1x1x5x16xbf16> to vector<5x16xbf16>
    %cst_105 = arith.constant dense<0.000000e+00> : vector<128x16xf32>
    %79 = tpu.matmul %76, %78, %cst_105 {dimension_numbers = #tpu.dot_dimension_numbers<[1], [0], [0], [1], [0, 0, 1, 1], [], []>} : vector<128x5xbf16>, vector<5x16xbf16>, vector<128x16xf32> -> vector<128x16xf32>
    %80 = arith.addf %72, %79 : vector<128x16xf32>
    %c0_106 = arith.constant 0 : index
    %c0_107 = arith.constant 0 : index
    %c0_108 = arith.constant 0 : index
    %c1_109 = arith.constant 1 : index
    %c1_110 = arith.constant 1 : index
    %c0_111 = arith.constant 0 : index
    %81 = vector.load %arg0[%c0_106, %c0_107, %c0_108, %c1_109, %c1_110, %c0_111] : memref<2x2x2x9x9x5xf32, #tpu.memory_space<vmem>>, vector<1x1x2x8x8x5xf32>
    %82 = vector.shape_cast %81 : vector<1x1x2x8x8x5xf32> to vector<2x8x8x5xf32>
    %83 = vector.shape_cast %82 : vector<2x8x8x5xf32> to vector<128x5xf32>
    %84 = arith.truncf %83 : vector<128x5xf32> to vector<128x5xbf16>
    %c2_112 = arith.constant 2 : index
    %c2_113 = arith.constant 2 : index
    %c0_114 = arith.constant 0 : index
    %c0_115 = arith.constant 0 : index
    %85 = vector.load %arg1[%c2_112, %c2_113, %c0_114, %c0_115] : memref<4x4x5x16xbf16, #tpu.memory_space<vmem>>, vector<1x1x5x16xbf16>
    %86 = vector.shape_cast %85 : vector<1x1x5x16xbf16> to vector<5x16xbf16>
    %cst_116 = arith.constant dense<0.000000e+00> : vector<128x16xf32>
    %87 = tpu.matmul %84, %86, %cst_116 {dimension_numbers = #tpu.dot_dimension_numbers<[1], [0], [0], [1], [0, 0, 1, 1], [], []>} : vector<128x5xbf16>, vector<5x16xbf16>, vector<128x16xf32> -> vector<128x16xf32>
    %88 = arith.addf %80, %87 : vector<128x16xf32>
    %c0_117 = arith.constant 0 : index
    %c1_118 = arith.constant 1 : index
    %c0_119 = arith.constant 0 : index
    %c1_120 = arith.constant 1 : index
    %c1_121 = arith.constant 1 : index
    %c0_122 = arith.constant 0 : index
    %89 = vector.load %arg0[%c0_117, %c1_118, %c0_119, %c1_120, %c1_121, %c0_122] : memref<2x2x2x9x9x5xf32, #tpu.memory_space<vmem>>, vector<1x1x2x8x8x5xf32>
    %90 = vector.shape_cast %89 : vector<1x1x2x8x8x5xf32> to vector<2x8x8x5xf32>
    %91 = vector.shape_cast %90 : vector<2x8x8x5xf32> to vector<128x5xf32>
    %92 = arith.truncf %91 : vector<128x5xf32> to vector<128x5xbf16>
    %c2_123 = arith.constant 2 : index
    %c3_124 = arith.constant 3 : index
    %c0_125 = arith.constant 0 : index
    %c0_126 = arith.constant 0 : index
    %93 = vector.load %arg1[%c2_123, %c3_124, %c0_125, %c0_126] : memref<4x4x5x16xbf16, #tpu.memory_space<vmem>>, vector<1x1x5x16xbf16>
    %94 = vector.shape_cast %93 : vector<1x1x5x16xbf16> to vector<5x16xbf16>
    %cst_127 = arith.constant dense<0.000000e+00> : vector<128x16xf32>
    %95 = tpu.matmul %92, %94, %cst_127 {dimension_numbers = #tpu.dot_dimension_numbers<[1], [0], [0], [1], [0, 0, 1, 1], [], []>} : vector<128x5xbf16>, vector<5x16xbf16>, vector<128x16xf32> -> vector<128x16xf32>
    %96 = arith.addf %88, %95 : vector<128x16xf32>
    %c1_128 = arith.constant 1 : index
    %c0_129 = arith.constant 0 : index
    %c0_130 = arith.constant 0 : index
    %c1_131 = arith.constant 1 : index
    %c0_132 = arith.constant 0 : index
    %c0_133 = arith.constant 0 : index
    %97 = vector.load %arg0[%c1_128, %c0_129, %c0_130, %c1_131, %c0_132, %c0_133] : memref<2x2x2x9x9x5xf32, #tpu.memory_space<vmem>>, vector<1x1x2x8x8x5xf32>
    %98 = vector.shape_cast %97 : vector<1x1x2x8x8x5xf32> to vector<2x8x8x5xf32>
    %99 = vector.shape_cast %98 : vector<2x8x8x5xf32> to vector<128x5xf32>
    %100 = arith.truncf %99 : vector<128x5xf32> to vector<128x5xbf16>
    %c3_134 = arith.constant 3 : index
    %c0_135 = arith.constant 0 : index
    %c0_136 = arith.constant 0 : index
    %c0_137 = arith.constant 0 : index
    %101 = vector.load %arg1[%c3_134, %c0_135, %c0_136, %c0_137] : memref<4x4x5x16xbf16, #tpu.memory_space<vmem>>, vector<1x1x5x16xbf16>
    %102 = vector.shape_cast %101 : vector<1x1x5x16xbf16> to vector<5x16xbf16>
    %cst_138 = arith.constant dense<0.000000e+00> : vector<128x16xf32>
    %103 = tpu.matmul %100, %102, %cst_138 {dimension_numbers = #tpu.dot_dimension_numbers<[1], [0], [0], [1], [0, 0, 1, 1], [], []>} : vector<128x5xbf16>, vector<5x16xbf16>, vector<128x16xf32> -> vector<128x16xf32>
    %104 = arith.addf %96, %103 : vector<128x16xf32>
    %c1_139 = arith.constant 1 : index
    %c1_140 = arith.constant 1 : index
    %c0_141 = arith.constant 0 : index
    %c1_142 = arith.constant 1 : index
    %c0_143 = arith.constant 0 : index
    %c0_144 = arith.constant 0 : index
    %105 = vector.load %arg0[%c1_139, %c1_140, %c0_141, %c1_142, %c0_143, %c0_144] : memref<2x2x2x9x9x5xf32, #tpu.memory_space<vmem>>, vector<1x1x2x8x8x5xf32>
    %106 = vector.shape_cast %105 : vector<1x1x2x8x8x5xf32> to vector<2x8x8x5xf32>
    %107 = vector.shape_cast %106 : vector<2x8x8x5xf32> to vector<128x5xf32>
    %108 = arith.truncf %107 : vector<128x5xf32> to vector<128x5xbf16>
    %c3_145 = arith.constant 3 : index
    %c1_146 = arith.constant 1 : index
    %c0_147 = arith.constant 0 : index
    %c0_148 = arith.constant 0 : index
    %109 = vector.load %arg1[%c3_145, %c1_146, %c0_147, %c0_148] : memref<4x4x5x16xbf16, #tpu.memory_space<vmem>>, vector<1x1x5x16xbf16>
    %110 = vector.shape_cast %109 : vector<1x1x5x16xbf16> to vector<5x16xbf16>
    %cst_149 = arith.constant dense<0.000000e+00> : vector<128x16xf32>
    %111 = tpu.matmul %108, %110, %cst_149 {dimension_numbers = #tpu.dot_dimension_numbers<[1], [0], [0], [1], [0, 0, 1, 1], [], []>} : vector<128x5xbf16>, vector<5x16xbf16>, vector<128x16xf32> -> vector<128x16xf32>
    %112 = arith.addf %104, %111 : vector<128x16xf32>
    %c1_150 = arith.constant 1 : index
    %c0_151 = arith.constant 0 : index
    %c0_152 = arith.constant 0 : index
    %c1_153 = arith.constant 1 : index
    %c1_154 = arith.constant 1 : index
    %c0_155 = arith.constant 0 : index
    %113 = vector.load %arg0[%c1_150, %c0_151, %c0_152, %c1_153, %c1_154, %c0_155] : memref<2x2x2x9x9x5xf32, #tpu.memory_space<vmem>>, vector<1x1x2x8x8x5xf32>
    %114 = vector.shape_cast %113 : vector<1x1x2x8x8x5xf32> to vector<2x8x8x5xf32>
    %115 = vector.shape_cast %114 : vector<2x8x8x5xf32> to vector<128x5xf32>
    %116 = arith.truncf %115 : vector<128x5xf32> to vector<128x5xbf16>
    %c3_156 = arith.constant 3 : index
    %c2_157 = arith.constant 2 : index
    %c0_158 = arith.constant 0 : index
    %c0_159 = arith.constant 0 : index
    %117 = vector.load %arg1[%c3_156, %c2_157, %c0_158, %c0_159] : memref<4x4x5x16xbf16, #tpu.memory_space<vmem>>, vector<1x1x5x16xbf16>
    %118 = vector.shape_cast %117 : vector<1x1x5x16xbf16> to vector<5x16xbf16>
    %cst_160 = arith.constant dense<0.000000e+00> : vector<128x16xf32>
    %119 = tpu.matmul %116, %118, %cst_160 {dimension_numbers = #tpu.dot_dimension_numbers<[1], [0], [0], [1], [0, 0, 1, 1], [], []>} : vector<128x5xbf16>, vector<5x16xbf16>, vector<128x16xf32> -> vector<128x16xf32>
    %120 = arith.addf %112, %119 : vector<128x16xf32>
    %c1_161 = arith.constant 1 : index
    %c1_162 = arith.constant 1 : index
    %c0_163 = arith.constant 0 : index
    %c1_164 = arith.constant 1 : index
    %c1_165 = arith.constant 1 : index
    %c0_166 = arith.constant 0 : index
    %121 = vector.load %arg0[%c1_161, %c1_162, %c0_163, %c1_164, %c1_165, %c0_166] : memref<2x2x2x9x9x5xf32, #tpu.memory_space<vmem>>, vector<1x1x2x8x8x5xf32>
    %122 = vector.shape_cast %121 : vector<1x1x2x8x8x5xf32> to vector<2x8x8x5xf32>
    %123 = vector.shape_cast %122 : vector<2x8x8x5xf32> to vector<128x5xf32>
    %124 = arith.truncf %123 : vector<128x5xf32> to vector<128x5xbf16>
    %c3_167 = arith.constant 3 : index
    %c3_168 = arith.constant 3 : index
    %c0_169 = arith.constant 0 : index
    %c0_170 = arith.constant 0 : index
    %125 = vector.load %arg1[%c3_167, %c3_168, %c0_169, %c0_170] : memref<4x4x5x16xbf16, #tpu.memory_space<vmem>>, vector<1x1x5x16xbf16>
    %126 = vector.shape_cast %125 : vector<1x1x5x16xbf16> to vector<5x16xbf16>
    %cst_171 = arith.constant dense<0.000000e+00> : vector<128x16xf32>
    %127 = tpu.matmul %124, %126, %cst_171 {dimension_numbers = #tpu.dot_dimension_numbers<[1], [0], [0], [1], [0, 0, 1, 1], [], []>} : vector<128x5xbf16>, vector<5x16xbf16>, vector<128x16xf32> -> vector<128x16xf32>
    %128 = arith.addf %120, %127 : vector<128x16xf32>
    %c0_172 = arith.constant 0 : index
    %c0_173 = arith.constant 0 : index
    %129 = vector.load %arg2[%c0_172, %c0_173] : memref<1x16xf32, #tpu.memory_space<vmem>>, vector<1x16xf32>
    %130 = vector.broadcast %129 : vector<1x16xf32> to vector<128x16xf32>
    %131 = arith.addf %128, %130 : vector<128x16xf32>
    %cst_174 = arith.constant 0.000000e+00 : f32
    %132 = vector.broadcast %cst_174 : f32 to vector<128x16xf32>
    %133 = arith.cmpf ogt, %131, %132 : vector<128x16xf32>
    %cst_175 = arith.constant 2.000000e-01 : f32
    %134 = vector.broadcast %cst_175 : f32 to vector<128x16xf32>
    %135 = arith.mulf %134, %131 : vector<128x16xf32>
    %136 = arith.select %133, %131, %135 : vector<128x16xi1>, vector<128x16xf32>
    %137 = arith.truncf %136 : vector<128x16xf32> to vector<128x16xbf16>
    %c0_176 = arith.constant 0 : index
    %c0_177 = arith.constant 0 : index
    %138 = vector.load %arg3[%c0_176, %c0_177] : memref<128x16xbf16, #tpu.memory_space<vmem>>, vector<128x16xbf16>
    tpu.vector_store %arg3[%c0_176, %c0_177], %137 {strides = array<i32>} : memref<128x16xbf16, #tpu.memory_space<vmem>>, vector<128x16xbf16>,
    return
  }
}

module attributes {stable_mosaic.version = 11 : i64} {
  func.func @_hidden_tail_kernel(%arg0: memref<32x256xbf16, #tpu.memory_space<vmem>>, %arg1: memref<256x32xbf16, #tpu.memory_space<vmem>>, %arg2: memref<1x32xf32, #tpu.memory_space<vmem>>, %arg3: memref<1x32xf32, #tpu.memory_space<vmem>>, %arg4: memref<1x16x32xf32, #tpu.memory_space<vmem>>, %arg5: memref<1x1xf32, #tpu.memory_space<vmem>>, %arg6: memref<2x1xf32, #tpu.memory_space<vmem>>) attributes {dimension_semantics = [], scalar_prefetch = 0 : i64, scratch_operands = 0 : i64, tpu.core_type = #tpu.core_type<tc>} {
    %c0 = arith.constant 0 : index
    %c0_0 = arith.constant 0 : index
    %0 = vector.load %arg0[%c0, %c0_0] : memref<32x256xbf16, #tpu.memory_space<vmem>>, vector<32x256xbf16>
    %c0_1 = arith.constant 0 : index
    %c0_2 = arith.constant 0 : index
    %1 = vector.load %arg1[%c0_1, %c0_2] : memref<256x32xbf16, #tpu.memory_space<vmem>>, vector<256x32xbf16>
    %cst = arith.constant dense<0.000000e+00> : vector<32x32xf32>
    %2 = tpu.matmul %0, %1, %cst {dimension_numbers = #tpu.dot_dimension_numbers<[1], [0], [0], [1], [0, 0, 1, 1], [], []>} : vector<32x256xbf16>, vector<256x32xbf16>, vector<32x32xf32> -> vector<32x32xf32>
    %3 = vector.shape_cast %2 : vector<32x32xf32> to vector<2x16x32xf32>
    %cst_3 = arith.constant dense<0.000000e+00> : vector<2x32xf32>
    %4 = vector.multi_reduction <add>, %3, %cst_3 [1] : vector<2x16x32xf32> to vector<2x32xf32>
    %5 = vector.shape_cast %4 : vector<2x32xf32> to vector<2x1x32xf32>
    %cst_4 = arith.constant 1.600000e+01 : f32
    %6 = vector.broadcast %cst_4 : f32 to vector<2x1x32xf32>
    %7 = arith.divf %5, %6 : vector<2x1x32xf32>
    %8 = vector.broadcast %7 : vector<2x1x32xf32> to vector<2x16x32xf32>
    %9 = arith.subf %3, %8 : vector<2x16x32xf32>
    %10 = arith.mulf %9, %9 : vector<2x16x32xf32>
    %cst_5 = arith.constant dense<0.000000e+00> : vector<2x32xf32>
    %11 = vector.multi_reduction <add>, %10, %cst_5 [1] : vector<2x16x32xf32> to vector<2x32xf32>
    %12 = vector.shape_cast %11 : vector<2x32xf32> to vector<2x1x32xf32>
    %cst_6 = arith.constant 1.600000e+01 : f32
    %13 = vector.broadcast %cst_6 : f32 to vector<2x1x32xf32>
    %14 = arith.divf %12, %13 : vector<2x1x32xf32>
    %15 = vector.broadcast %7 : vector<2x1x32xf32> to vector<2x16x32xf32>
    %16 = arith.subf %3, %15 : vector<2x16x32xf32>
    %cst_7 = arith.constant 9.99999974E-6 : f32
    %17 = vector.broadcast %cst_7 : f32 to vector<2x1x32xf32>
    %18 = arith.addf %14, %17 : vector<2x1x32xf32>
    %19 = math.rsqrt %18 : vector<2x1x32xf32>
    %20 = vector.broadcast %19 : vector<2x1x32xf32> to vector<2x16x32xf32>
    %21 = arith.mulf %16, %20 : vector<2x16x32xf32>
    %c0_8 = arith.constant 0 : index
    %c0_9 = arith.constant 0 : index
    %22 = vector.load %arg2[%c0_8, %c0_9] : memref<1x32xf32, #tpu.memory_space<vmem>>, vector<1x32xf32>
    %23 = vector.shape_cast %22 : vector<1x32xf32> to vector<1x1x32xf32>
    %24 = vector.broadcast %23 : vector<1x1x32xf32> to vector<2x16x32xf32>
    %25 = arith.mulf %21, %24 : vector<2x16x32xf32>
    %c0_10 = arith.constant 0 : index
    %c0_11 = arith.constant 0 : index
    %26 = vector.load %arg3[%c0_10, %c0_11] : memref<1x32xf32, #tpu.memory_space<vmem>>, vector<1x32xf32>
    %27 = vector.shape_cast %26 : vector<1x32xf32> to vector<1x1x32xf32>
    %28 = vector.broadcast %27 : vector<1x1x32xf32> to vector<2x16x32xf32>
    %29 = arith.addf %25, %28 : vector<2x16x32xf32>
    %cst_12 = arith.constant 0.000000e+00 : f32
    %30 = vector.broadcast %cst_12 : f32 to vector<2x16x32xf32>
    %31 = arith.cmpf ogt, %29, %30 : vector<2x16x32xf32>
    %cst_13 = arith.constant 2.000000e-01 : f32
    %32 = vector.broadcast %cst_13 : f32 to vector<2x16x32xf32>
    %33 = arith.mulf %32, %29 : vector<2x16x32xf32>
    %34 = arith.select %31, %29, %33 : vector<2x16x32xi1>, vector<2x16x32xf32>
    %c0_14 = arith.constant 0 : index
    %c0_15 = arith.constant 0 : index
    %c0_16 = arith.constant 0 : index
    %35 = vector.load %arg4[%c0_14, %c0_15, %c0_16] : memref<1x16x32xf32, #tpu.memory_space<vmem>>, vector<1x16x32xf32>
    %36 = vector.shape_cast %35 : vector<1x16x32xf32> to vector<16x32xf32>
    %37 = vector.shape_cast %36 : vector<16x32xf32> to vector<1x16x32xf32>
    %38 = vector.broadcast %37 : vector<1x16x32xf32> to vector<2x16x32xf32>
    %39 = arith.mulf %34, %38 : vector<2x16x32xf32>
    %cst_17 = arith.constant dense<0.000000e+00> : vector<2x16xf32>
    %40 = vector.multi_reduction <add>, %39, %cst_17 [2] : vector<2x16x32xf32> to vector<2x16xf32>
    %41 = vector.shape_cast %40 : vector<2x16xf32> to vector<2x16x1xf32>
    %cst_18 = arith.constant dense<0.000000e+00> : vector<2x1xf32>
    %42 = vector.multi_reduction <add>, %41, %cst_18 [1] : vector<2x16x1xf32> to vector<2x1xf32>
    %43 = vector.shape_cast %42 : vector<2x1xf32> to vector<2x1x1xf32>
    %44 = vector.shape_cast %43 : vector<2x1x1xf32> to vector<2x1xf32>
    %c0_19 = arith.constant 0 : index
    %c0_20 = arith.constant 0 : index
    %45 = vector.load %arg5[%c0_19, %c0_20] : memref<1x1xf32, #tpu.memory_space<vmem>>, vector<1x1xf32>
    %46 = vector.broadcast %45 : vector<1x1xf32> to vector<2x1xf32>
    %47 = arith.addf %44, %46 : vector<2x1xf32>
    %c0_21 = arith.constant 0 : index
    %c0_22 = arith.constant 0 : index
    %48 = vector.load %arg6[%c0_21, %c0_22] : memref<2x1xf32, #tpu.memory_space<vmem>>, vector<2x1xf32>
    tpu.vector_store %arg6[%c0_21, %c0_22], %47 {strides = array<i32>} : memref<2x1xf32, #tpu.memory_space<vmem>>, vector<2x1xf32>,
    return
  }
}

</mosaic_0001>

<llo_original>
// kernel: digit_image_discriminator_forward.2
$region0: #{digit_image_discriminator_forward.2}
  #allocation0 [shape = 'u32[]', space=smem, size = 0x4, offset = 0x4, fixed_abs, tag = 'smem constant byte address 0x4 - core index']
  #allocation1 [shape = 'u32[72,128]{1,0:T(1,128)}', space=vmem, size = 0x9000, scoped, tag = 'internal scratch']
  %s0 = inlined_call_operand.vmem [shape: f32[2,2,2,9,9,5], index: 0, kind: input, shape index: {}]
  %s1 = inlined_call_operand.vmem [shape: bf16[4,4,5,16], index: 1, kind: input, shape index: {}]
  %s2 = inlined_call_operand.vmem [shape: f32[1,16], index: 2, kind: input, shape index: {}]
  %s3 = inlined_call_operand.vmem [shape: bf16[128,16], index: 3, kind: output, shape index: {}]
  %s4 = sld [smem:[#allocation0]]
  $region22: #{digit_image_discriminator_forward.2} parent=0
    _
  %s6 = ssub.s32 1, %s4
  %s7 = scalar_select 0, %s6, %s4
  // Predicated region
  $region2: #{digit_image_discriminator_forward.2} parent=0 // pred_check
    _
  $region3: #{digit_image_discriminator_forward.2} parent=0 // pred_check_branch
    %9 = sbr.rel (0) target = $region5
  $region4: #{digit_image_discriminator_forward.2} parent=0 // pred_region
    _
  $region5: #{digit_image_discriminator_forward.2} parent=0 // pred_fallthru
    _
  // Predicated region
  $region6: #{digit_image_discriminator_forward.2} parent=0 // pred_check
    _
  $region7: #{digit_image_discriminator_forward.2} parent=0 // pred_check_branch
    %11 = sbr.rel (0) target = $region9
  $region8: #{digit_image_discriminator_forward.2} parent=0 // pred_region
    _
  $region9: #{digit_image_discriminator_forward.2} parent=0 // pred_fallthru
    _
  // Predicated region
  $region10: #{digit_image_discriminator_forward.2} parent=0 // pred_check
    _
  $region11: #{digit_image_discriminator_forward.2} parent=0 // pred_check_branch
    %13 = sbr.rel (0) target = $region13
  $region12: #{digit_image_discriminator_forward.2} parent=0 // pred_region
    _
  $region13: #{digit_image_discriminator_forward.2} parent=0 // pred_fallthru
    _
  %v15 = vld [vmem:[%s0] sm:$0xff]
  %v16 = vld [vmem:[%s0 + $0x10] sm:$0xff]
  %v17 = vld [vmem:[%s0 + $0x20] sm:$0xff]
  %v18 = vld [vmem:[%s0 + $0x30] sm:$0xff]
  %v19 = vld [vmem:[%s0 + $0x40] sm:$0xff]
  %v20 = vld [vmem:[%s0 + $0x50] sm:$0xff]
  %v21 = vld [vmem:[%s0 + $0x60] sm:$0xff]
  %v22 = vld [vmem:[%s0 + $0x70] sm:$0xff]
  %v23 = vld [vmem:[%s0 + $0x90] sm:$0xff]
  %v24 = vld [vmem:[%s0 + $0xa0] sm:$0xff]
  %v25 = vld [vmem:[%s0 + $0xb0] sm:$0xff]
  %v26 = vld [vmem:[%s0 + $0xc0] sm:$0xff]
  %v27 = vld [vmem:[%s0 + $0xd0] sm:$0xff]
  %v28 = vld [vmem:[%s0 + $0xe0] sm:$0xff]
  %v29 = vld [vmem:[%s0 + $0xf0] sm:$0xff]
  %v30 = vld [vmem:[%s0 + $0x100] sm:$0xff]
  %v31 = vpack.c.bf16 %v16, %v15
  %v32 = vpack.c.bf16 %v18, %v17
  %v33 = vpack.c.bf16 %v20, %v19
  %v34 = vpack.c.bf16 %v22, %v21
  %v35 = vpack.c.bf16 %v24, %v23
  %v36 = vpack.c.bf16 %v26, %v25
  %v37 = vpack.c.bf16 %v28, %v27
  %v38 = vpack.c.bf16 %v30, %v29
  %v39 = vld [vmem:[%s1] sm:$0x7]
  %s40 = scalar_lea.vmem %s0, 288
  %v41 = vld [vmem:[%s40] sm:$0xff]
  %v42 = vld [vmem:[%s40 + $0x10] sm:$0xff]
  %v43 = vld [vmem:[%s40 + $0x20] sm:$0xff]
  %v44 = vld [vmem:[%s40 + $0x30] sm:$0xff]
  %v45 = vld [vmem:[%s40 + $0x40] sm:$0xff]
  %v46 = vld [vmem:[%s40 + $0x50] sm:$0xff]
  %v47 = vld [vmem:[%s40 + $0x60] sm:$0xff]
  %v48 = vld [vmem:[%s40 + $0x70] sm:$0xff]
  %v49 = vld [vmem:[%s40 + $0x90] sm:$0xff]
  %v50 = vld [vmem:[%s40 + $0xa0] sm:$0xff]
  %v51 = vld [vmem:[%s40 + $0xb0] sm:$0xff]
  %v52 = vld [vmem:[%s40 + $0xc0] sm:$0xff]
  %v53 = vld [vmem:[%s40 + $0xd0] sm:$0xff]
  %v54 = vld [vmem:[%s40 + $0xe0] sm:$0xff]
  %v55 = vld [vmem:[%s40 + $0xf0] sm:$0xff]
  %v56 = vld [vmem:[%s40 + $0x100] sm:$0xff]
  %v57 = vpack.c.bf16 %v42, %v41
  %v58 = vpack.c.bf16 %v44, %v43
  %v59 = vpack.c.bf16 %v46, %v45
  %v60 = vpack.c.bf16 %v48, %v47
  %v61 = vpack.c.bf16 %v50, %v49
  %v62 = vpack.c.bf16 %v52, %v51
  %v63 = vpack.c.bf16 %v54, %v53
  %v64 = vpack.c.bf16 %v56, %v55
  %s65 = scalar_lea.vmem %s1, 4
  %v66 = vld [vmem:[%s65] sm:$0x7]
  %vm67 = vcmask 39936
  %v69 = vsel %vm67, %v57, 0
  %v72 = vsel %vm67, %v58, 0
  %v75 = vsel %vm67, %v59, 0
  %v78 = vsel %vm67, %v60, 0
  %v81 = vsel %vm67, %v61, 0
  %v84 = vsel %vm67, %v62, 0
  %v87 = vsel %vm67, %v63, 0
  %v90 = vsel %vm67, %v64, 0
  %vm92 = vcmask 1041408
  %vm93 = vcmask 1042432
  %v94 = vsel %vm92, 4294967295, 65535
  %v95 = vsel %vm93, %v94, 0
  %v97 = vand.u32 %v66, %v95
  %99 = vmatpush.bf16.msra.mxu0 0
  %100 = vmatpush.bf16.msra.mxu0 0
  %101 = vmatpush.bf16.msra.mxu0 0
  %102 = vmatpush.bf16.msra.mxu0 0
  %103 = vmatpush.bf16.msra.mxu0 0
  %104 = vmatpush.bf16.msra.mxu0 0
  %105 = vmatpush.bf16.msra.mxu0 0
  %106 = vmatpush.bf16.msra.mxu0 %v97
  %107 = vmatmul.bf16.gmra.mxu0 %v69
  %v108 = vpop.f32.mrf.mxu0
  %v109 = vadd.f32 0.0, %v108
  %v110 = vpop.f32.mrf.mxu0
  %v111 = vadd.f32 0.0, %v110
  %112 = vmatmul.bf16.gmra.mxu0 %v72
  %v113 = vpop.f32.mrf.mxu0
  %v114 = vadd.f32 0.0, %v113
  %v115 = vpop.f32.mrf.mxu0
  %v116 = vadd.f32 0.0, %v115
  %117 = vmatmul.bf16.gmra.mxu0 %v75
  %v118 = vpop.f32.mrf.mxu0
  %v119 = vadd.f32 0.0, %v118
  %v120 = vpop.f32.mrf.mxu0
  %v121 = vadd.f32 0.0, %v120
  %122 = vmatmul.bf16.gmra.mxu0 %v78
  %v123 = vpop.f32.mrf.mxu0
  %v124 = vadd.f32 0.0, %v123
  %v125 = vpop.f32.mrf.mxu0
  %v126 = vadd.f32 0.0, %v125
  %127 = vmatmul.bf16.gmra.mxu0 %v81
  %v128 = vpop.f32.mrf.mxu0
  %v129 = vadd.f32 0.0, %v128
  %v130 = vpop.f32.mrf.mxu0
  %v131 = vadd.f32 0.0, %v130
  %132 = vmatmul.bf16.gmra.mxu0 %v84
  %v133 = vpop.f32.mrf.mxu0
  %v134 = vadd.f32 0.0, %v133
  %v135 = vpop.f32.mrf.mxu0
  %v136 = vadd.f32 0.0, %v135
  %137 = vmatmul.bf16.gmra.mxu0 %v87
  %v138 = vpop.f32.mrf.mxu0
  %v139 = vadd.f32 0.0, %v138
  %v140 = vpop.f32.mrf.mxu0
  %v141 = vadd.f32 0.0, %v140
  %142 = vmatmul.bf16.gmra.mxu0 %v90
  %v143 = vpop.f32.mrf.mxu0
  %v144 = vadd.f32 0.0, %v143
  %v145 = vpop.f32.mrf.mxu0
  %v146 = vadd.f32 0.0, %v145
  %147 = vdwg.mxu0
  %v149 = vsel %vm67, %v31, 0
  %v152 = vsel %vm67, %v32, 0
  %v155 = vsel %vm67, %v33, 0
  %v158 = vsel %vm67, %v34, 0
  %v161 = vsel %vm67, %v35, 0
  %v164 = vsel %vm67, %v36, 0
  %v167 = vsel %vm67, %v37, 0
  %v170 = vsel %vm67, %v38, 0
  %v173 = vand.u32 %v39, %v95
  %175 = vmatpush.bf16.msra.mxu0 0
  %176 = vmatpush.bf16.msra.mxu0 0
  %177 = vmatpush.bf16.msra.mxu0 0
  %178 = vmatpush.bf16.msra.mxu0 0
  %179 = vmatpush.bf16.msra.mxu0 0
  %180 = vmatpush.bf16.msra.mxu0 0
  %181 = vmatpush.bf16.msra.mxu0 0
  %182 = vmatpush.bf16.msra.mxu0 %v173
  %183 = vmatmul.bf16.gmra.mxu0 %v149
  %v184 = vpop.f32.mrf.mxu0
  %v185 = vadd.f32 %v109, %v184
  %v186 = vpop.f32.mrf.mxu0
  %v187 = vadd.f32 %v111, %v186
  %188 = vmatmul.bf16.gmra.mxu0 %v152
  %v189 = vpop.f32.mrf.mxu0
  %v190 = vadd.f32 %v114, %v189
  %v191 = vpop.f32.mrf.mxu0
  %v192 = vadd.f32 %v116, %v191
  %193 = vmatmul.bf16.gmra.mxu0 %v155
  %v194 = vpop.f32.mrf.mxu0
  %v195 = vadd.f32 %v119, %v194
  %v196 = vpop.f32.mrf.mxu0
  %v197 = vadd.f32 %v121, %v196
  %198 = vmatmul.bf16.gmra.mxu0 %v158
  %v199 = vpop.f32.mrf.mxu0
  %v200 = vadd.f32 %v124, %v199
  %v201 = vpop.f32.mrf.mxu0
  %v202 = vadd.f32 %v126, %v201
  %203 = vmatmul.bf16.gmra.mxu0 %v161
  %v204 = vpop.f32.mrf.mxu0
  %v205 = vadd.f32 %v129, %v204
  %v206 = vpop.f32.mrf.mxu0
  %v207 = vadd.f32 %v131, %v206
  %208 = vmatmul.bf16.gmra.mxu0 %v164
  %v209 = vpop.f32.mrf.mxu0
  %v210 = vadd.f32 %v134, %v209
  %v211 = vpop.f32.mrf.mxu0
  %v212 = vadd.f32 %v136, %v211
  %213 = vmatmul.bf16.gmra.mxu0 %v167
  %v214 = vpop.f32.mrf.mxu0
  %v215 = vadd.f32 %v139, %v214
  %v216 = vpop.f32.mrf.mxu0
  %v217 = vadd.f32 %v141, %v216
  %218 = vmatmul.bf16.gmra.mxu0 %v170
  %v219 = vpop.f32.mrf.mxu0
  %v220 = vadd.f32 %v144, %v219
  %v221 = vpop.f32.mrf.mxu0
  %v222 = vadd.f32 %v146, %v221
  %223 = vdwg.mxu0
  %v224 = vld [vmem:[%s0 + $0x1] sm:$0xff]
  %v225 = vld [vmem:[%s0 + $0x11] sm:$0xff]
  %v226 = vld [vmem:[%s0 + $0x21] sm:$0xff]
  %v227 = vld [vmem:[%s0 + $0x31] sm:$0xff]
  %v228 = vld [vmem:[%s0 + $0x41] sm:$0xff]
  %v229 = vld [vmem:[%s0 + $0x51] sm:$0xff]
  %v230 = vld [vmem:[%s0 + $0x61] sm:$0xff]
  %v231 = vld [vmem:[%s0 + $0x71] sm:$0xff]
  %v232 = vld [vmem:[%s0 + $0x91] sm:$0xff]
  %v233 = vld [vmem:[%s0 + $0xa1] sm:$0xff]
  %v234 = vld [vmem:[%s0 + $0xb1] sm:$0xff]
  %v235 = vld [vmem:[%s0 + $0xc1] sm:$0xff]
  %v236 = vld [vmem:[%s0 + $0xd1] sm:$0xff]
  %v237 = vld [vmem:[%s0 + $0xe1] sm:$0xff]
  %v238 = vld [vmem:[%s0 + $0xf1] sm:$0xff]
  %v239 = vld [vmem:[%s0 + $0x101] sm:$0xff]
  %v240 = vpack.c.bf16 %v225, %v224
  %v241 = vpack.c.bf16 %v227, %v226
  %v242 = vpack.c.bf16 %v229, %v228
  %v243 = vpack.c.bf16 %v231, %v230
  %v244 = vpack.c.bf16 %v233, %v232
  %v245 = vpack.c.bf16 %v235, %v234
  %v246 = vpack.c.bf16 %v237, %v236
  %v247 = vpack.c.bf16 %v239, %v238
  %s248 = scalar_lea.vmem %s1, 8
  %v249 = vld [vmem:[%s248] sm:$0x7]
  %v251 = vsel %vm67, %v240, 0
  %v254 = vsel %vm67, %v241, 0
  %v257 = vsel %vm67, %v242, 0
  %v260 = vsel %vm67, %v243, 0
  %v263 = vsel %vm67, %v244, 0
  %v266 = vsel %vm67, %v245, 0
  %v269 = vsel %vm67, %v246, 0
  %v272 = vsel %vm67, %v247, 0
  %v275 = vand.u32 %v249, %v95
  %277 = vmatpush.bf16.msra.mxu0 0
  %278 = vmatpush.bf16.msra.mxu0 0
  %279 = vmatpush.bf16.msra.mxu0 0
  %280 = vmatpush.bf16.msra.mxu0 0
  %281 = vmatpush.bf16.msra.mxu0 0
  %282 = vmatpush.bf16.msra.mxu0 0
  %283 = vmatpush.bf16.msra.mxu0 0
  %284 = vmatpush.bf16.msra.mxu0 %v275
  %285 = vmatmul.bf16.gmra.mxu0 %v251
  %v286 = vpop.f32.mrf.mxu0
  %v287 = vadd.f32 0.0, %v286
  %v288 = vpop.f32.mrf.mxu0
  %v289 = vadd.f32 0.0, %v288
  %290 = vmatmul.bf16.gmra.mxu0 %v254
  %v291 = vpop.f32.mrf.mxu0
  %v292 = vadd.f32 0.0, %v291
  %v293 = vpop.f32.mrf.mxu0
  %v294 = vadd.f32 0.0, %v293
  %295 = vmatmul.bf16.gmra.mxu0 %v257
  %v296 = vpop.f32.mrf.mxu0
  %v297 = vadd.f32 0.0, %v296
  %v298 = vpop.f32.mrf.mxu0
  %v299 = vadd.f32 0.0, %v298
  %300 = vmatmul.bf16.gmra.mxu0 %v260
  %v301 = vpop.f32.mrf.mxu0
  %v302 = vadd.f32 0.0, %v301
  %v303 = vpop.f32.mrf.mxu0
  %v304 = vadd.f32 0.0, %v303
  %305 = vmatmul.bf16.gmra.mxu0 %v263
  %v306 = vpop.f32.mrf.mxu0
  %v307 = vadd.f32 0.0, %v306
  %v308 = vpop.f32.mrf.mxu0
  %v309 = vadd.f32 0.0, %v308
  %310 = vmatmul.bf16.gmra.mxu0 %v266
  %v311 = vpop.f32.mrf.mxu0
  %v312 = vadd.f32 0.0, %v311
  %v313 = vpop.f32.mrf.mxu0
  %v314 = vadd.f32 0.0, %v313
  %315 = vmatmul.bf16.gmra.mxu0 %v269
  %v316 = vpop.f32.mrf.mxu0
  %v317 = vadd.f32 0.0, %v316
  %v318 = vpop.f32.mrf.mxu0
  %v319 = vadd.f32 0.0, %v318
  %320 = vmatmul.bf16.gmra.mxu0 %v272
  %v321 = vpop.f32.mrf.mxu0
  %v322 = vadd.f32 0.0, %v321
  %v323 = vpop.f32.mrf.mxu0
  %v324 = vadd.f32 0.0, %v323
  %325 = vdwg.mxu0
  %v326 = vadd.f32 %v185, %v287
  %v327 = vadd.f32 %v187, %v289
  %v328 = vadd.f32 %v190, %v292
  %v329 = vadd.f32 %v192, %v294
  %v330 = vadd.f32 %v195, %v297
  %v331 = vadd.f32 %v197, %v299
  %v332 = vadd.f32 %v200, %v302
  %v333 = vadd.f32 %v202, %v304
  %v334 = vadd.f32 %v205, %v307
  %v335 = vadd.f32 %v207, %v309
  %v336 = vadd.f32 %v210, %v312
  %v337 = vadd.f32 %v212, %v314
  %v338 = vadd.f32 %v215, %v317
  %v339 = vadd.f32 %v217, %v319
  %v340 = vadd.f32 %v220, %v322
  %v341 = vadd.f32 %v222, %v324
  %v342 = vld [vmem:[%s40 + $0x1] sm:$0xff]
  %v343 = vld [vmem:[%s40 + $0x11] sm:$0xff]
  %v344 = vld [vmem:[%s40 + $0x21] sm:$0xff]
  %v345 = vld [vmem:[%s40 + $0x31] sm:$0xff]
  %v346 = vld [vmem:[%s40 + $0x41] sm:$0xff]
  %v347 = vld [vmem:[%s40 + $0x51] sm:$0xff]
  %v348 = vld [vmem:[%s40 + $0x61] sm:$0xff]
  %v349 = vld [vmem:[%s40 + $0x71] sm:$0xff]
  %v350 = vld [vmem:[%s40 + $0x91] sm:$0xff]
  %v351 = vld [vmem:[%s40 + $0xa1] sm:$0xff]
  %v352 = vld [vmem:[%s40 + $0xb1] sm:$0xff]
  %v353 = vld [vmem:[%s40 + $0xc1] sm:$0xff]
  %v354 = vld [vmem:[%s40 + $0xd1] sm:$0xff]
  %v355 = vld [vmem:[%s40 + $0xe1] sm:$0xff]
  %v356 = vld [vmem:[%s40 + $0xf1] sm:$0xff]
  %v357 = vld [vmem:[%s40 + $0x101] sm:$0xff]
  %v358 = vpack.c.bf16 %v343, %v342
  %v359 = vpack.c.bf16 %v345, %v344
  %v360 = vpack.c.bf16 %v347, %v346
  %v361 = vpack.c.bf16 %v349, %v348
  %v362 = vpack.c.bf16 %v351, %v350
  %v363 = vpack.c.bf16 %v353, %v352
  %v364 = vpack.c.bf16 %v355, %v354
  %v365 = vpack.c.bf16 %v357, %v356
  %s366 = scalar_lea.vmem %s1, 12
  %v367 = vld [vmem:[%s366] sm:$0x7]
  %v369 = vsel %vm67, %v358, 0
  %v372 = vsel %vm67, %v359, 0
  %v375 = vsel %vm67, %v360, 0
  %v378 = vsel %vm67, %v361, 0
  %v381 = vsel %vm67, %v362, 0
  %v384 = vsel %vm67, %v363, 0
  %v387 = vsel %vm67, %v364, 0
  %v390 = vsel %vm67, %v365, 0
  %v393 = vand.u32 %v367, %v95
  %395 = vmatpush.bf16.msra.mxu0 0
  %396 = vmatpush.bf16.msra.mxu0 0
  %397 = vmatpush.bf16.msra.mxu0 0
  %398 = vmatpush.bf16.msra.mxu0 0
  %399 = vmatpush.bf16.msra.mxu0 0
  %400 = vmatpush.bf16.msra.mxu0 0
  %401 = vmatpush.bf16.msra.mxu0 0
  %402 = vmatpush.bf16.msra.mxu0 %v393
  %403 = vmatmul.bf16.gmra.mxu0 %v369
  %v404 = vpop.f32.mrf.mxu0
  %v405 = vadd.f32 0.0, %v404
  %v406 = vpop.f32.mrf.mxu0
  %v407 = vadd.f32 0.0, %v406
  %408 = vmatmul.bf16.gmra.mxu0 %v372
  %v409 = vpop.f32.mrf.mxu0
  %v410 = vadd.f32 0.0, %v409
  %v411 = vpop.f32.mrf.mxu0
  %v412 = vadd.f32 0.0, %v411
  %413 = vmatmul.bf16.gmra.mxu0 %v375
  %v414 = vpop.f32.mrf.mxu0
  %v415 = vadd.f32 0.0, %v414
  %v416 = vpop.f32.mrf.mxu0
  %v417 = vadd.f32 0.0, %v416
  %418 = vmatmul.bf16.gmra.mxu0 %v378
  %v419 = vpop.f32.mrf.mxu0
  %v420 = vadd.f32 0.0, %v419
  %v421 = vpop.f32.mrf.mxu0
  %v422 = vadd.f32 0.0, %v421
  %423 = vmatmul.bf16.gmra.mxu0 %v381
  %v424 = vpop.f32.mrf.mxu0
  %v425 = vadd.f32 0.0, %v424
  %v426 = vpop.f32.mrf.mxu0
  %v427 = vadd.f32 0.0, %v426
  %428 = vmatmul.bf16.gmra.mxu0 %v384
  %v429 = vpop.f32.mrf.mxu0
  %v430 = vadd.f32 0.0, %v429
  %v431 = vpop.f32.mrf.mxu0
  %v432 = vadd.f32 0.0, %v431
  %433 = vmatmul.bf16.gmra.mxu0 %v387
  %v434 = vpop.f32.mrf.mxu0
  %v435 = vadd.f32 0.0, %v434
  %v436 = vpop.f32.mrf.mxu0
  %v437 = vadd.f32 0.0, %v436
  %438 = vmatmul.bf16.gmra.mxu0 %v390
  %v439 = vpop.f32.mrf.mxu0
  %v440 = vadd.f32 0.0, %v439
  %v441 = vpop.f32.mrf.mxu0
  %v442 = vadd.f32 0.0, %v441
  %443 = vdwg.mxu0
  %v444 = vadd.f32 %v326, %v405
  %v445 = vadd.f32 %v327, %v407
  %v446 = vadd.f32 %v328, %v410
  %v447 = vadd.f32 %v329, %v412
  %v448 = vadd.f32 %v330, %v415
  %v449 = vadd.f32 %v331, %v417
  %v450 = vadd.f32 %v332, %v420
  %v451 = vadd.f32 %v333, %v422
  %v452 = vadd.f32 %v334, %v425
  %v453 = vadd.f32 %v335, %v427
  %v454 = vadd.f32 %v336, %v430
  %v455 = vadd.f32 %v337, %v432
  %v456 = vadd.f32 %v338, %v435
  %v457 = vadd.f32 %v339, %v437
  %v458 = vadd.f32 %v340, %v440
  %v459 = vadd.f32 %v341, %v442
  %s460 = scalar_lea.vmem %s0, 576
  %v461 = vld [vmem:[%s460] sm:$0xff]
  %v462 = vld [vmem:[%s460 + $0x10] sm:$0xff]
  %v463 = vld [vmem:[%s460 + $0x20] sm:$0xff]
  %v464 = vld [vmem:[%s460 + $0x30] sm:$0xff]
  %v465 = vld [vmem:[%s460 + $0x40] sm:$0xff]
  %v466 = vld [vmem:[%s460 + $0x50] sm:$0xff]
  %v467 = vld [vmem:[%s460 + $0x60] sm:$0xff]
  %v468 = vld [vmem:[%s460 + $0x70] sm:$0xff]
  %v469 = vld [vmem:[%s460 + $0x90] sm:$0xff]
  %v470 = vld [vmem:[%s460 + $0xa0] sm:$0xff]
  %v471 = vld [vmem:[%s460 + $0xb0] sm:$0xff]
  %v472 = vld [vmem:[%s460 + $0xc0] sm:$0xff]
  %v473 = vld [vmem:[%s460 + $0xd0] sm:$0xff]
  %v474 = vld [vmem:[%s460 + $0xe0] sm:$0xff]
  %v475 = vld [vmem:[%s460 + $0xf0] sm:$0xff]
  %v476 = vld [vmem:[%s460 + $0x100] sm:$0xff]
  %v477 = vpack.c.bf16 %v462, %v461
  %v478 = vpack.c.bf16 %v464, %v463
  %v479 = vpack.c.bf16 %v466, %v465
  %v480 = vpack.c.bf16 %v468, %v467
  %v481 = vpack.c.bf16 %v470, %v469
  %v482 = vpack.c.bf16 %v472, %v471
  %v483 = vpack.c.bf16 %v474, %v473
  %v484 = vpack.c.bf16 %v476, %v475
  %s485 = scalar_lea.vmem %s1, 16
  %v486 = vld [vmem:[%s485] sm:$0x7]
  %v488 = vsel %vm67, %v477, 0
  %v491 = vsel %vm67, %v478, 0
  %v494 = vsel %vm67, %v479, 0
  %v497 = vsel %vm67, %v480, 0
  %v500 = vsel %vm67, %v481, 0
  %v503 = vsel %vm67, %v482, 0
  %v506 = vsel %vm67, %v483, 0
  %v509 = vsel %vm67, %v484, 0
  %v512 = vand.u32 %v486, %v95
  %514 = vmatpush.bf16.msra.mxu0 0
  %515 = vmatpush.bf16.msra.mxu0 0
  %516 = vmatpush.bf16.msra.mxu0 0
  %517 = vmatpush.bf16.msra.mxu0 0
  %518 = vmatpush.bf16.msra.mxu0 0
  %519 = vmatpush.bf16.msra.mxu0 0
  %520 = vmatpush.bf16.msra.mxu0 0
  %521 = vmatpush.bf16.msra.mxu0 %v512
  %522 = vmatmul.bf16.gmra.mxu0 %v488
  %v523 = vpop.f32.mrf.mxu0
  %v524 = vadd.f32 0.0, %v523
  %v525 = vpop.f32.mrf.mxu0
  %v526 = vadd.f32 0.0, %v525
  %527 = vmatmul.bf16.gmra.mxu0 %v491
  %v528 = vpop.f32.mrf.mxu0
  %v529 = vadd.f32 0.0, %v528
  %v530 = vpop.f32.mrf.mxu0
  %v531 = vadd.f32 0.0, %v530
  %532 = vmatmul.bf16.gmra.mxu0 %v494
  %v533 = vpop.f32.mrf.mxu0
  %v534 = vadd.f32 0.0, %v533
  %v535 = vpop.f32.mrf.mxu0
  %v536 = vadd.f32 0.0, %v535
  %537 = vmatmul.bf16.gmra.mxu0 %v497
  %v538 = vpop.f32.mrf.mxu0
  %v539 = vadd.f32 0.0, %v538
  %v540 = vpop.f32.mrf.mxu0
  %v541 = vadd.f32 0.0, %v540
  %542 = vmatmul.bf16.gmra.mxu0 %v500
  %v543 = vpop.f32.mrf.mxu0
  %v544 = vadd.f32 0.0, %v543
  %v545 = vpop.f32.mrf.mxu0
  %v546 = vadd.f32 0.0, %v545
  %547 = vmatmul.bf16.gmra.mxu0 %v503
  %v548 = vpop.f32.mrf.mxu0
  %v549 = vadd.f32 0.0, %v548
  %v550 = vpop.f32.mrf.mxu0
  %v551 = vadd.f32 0.0, %v550
  %552 = vmatmul.bf16.gmra.mxu0 %v506
  %v553 = vpop.f32.mrf.mxu0
  %v554 = vadd.f32 0.0, %v553
  %v555 = vpop.f32.mrf.mxu0
  %v556 = vadd.f32 0.0, %v555
  %557 = vmatmul.bf16.gmra.mxu0 %v509
  %v558 = vpop.f32.mrf.mxu0
  %v559 = vadd.f32 0.0, %v558
  %v560 = vpop.f32.mrf.mxu0
  %v561 = vadd.f32 0.0, %v560
  %562 = vdwg.mxu0
  %v563 = vadd.f32 %v444, %v524
  %v564 = vadd.f32 %v445, %v526
  %v565 = vadd.f32 %v446, %v529
  %v566 = vadd.f32 %v447, %v531
  %v567 = vadd.f32 %v448, %v534
  %v568 = vadd.f32 %v449, %v536
  %v569 = vadd.f32 %v450, %v539
  %v570 = vadd.f32 %v451, %v541
  %v571 = vadd.f32 %v452, %v544
  %v572 = vadd.f32 %v453, %v546
  %v573 = vadd.f32 %v454, %v549
  %v574 = vadd.f32 %v455, %v551
  %v575 = vadd.f32 %v456, %v554
  %v576 = vadd.f32 %v457, %v556
  %v577 = vadd.f32 %v458, %v559
  %v578 = vadd.f32 %v459, %v561
  %s579 = scalar_lea.vmem %s0, 864
  %v580 = vld [vmem:[%s579] sm:$0xff]
  %v581 = vld [vmem:[%s579 + $0x10] sm:$0xff]
  %v582 = vld [vmem:[%s579 + $0x20] sm:$0xff]
  %v583 = vld [vmem:[%s579 + $0x30] sm:$0xff]
  %v584 = vld [vmem:[%s579 + $0x40] sm:$0xff]
  %v585 = vld [vmem:[%s579 + $0x50] sm:$0xff]
  %v586 = vld [vmem:[%s579 + $0x60] sm:$0xff]
  %v587 = vld [vmem:[%s579 + $0x70] sm:$0xff]
  %v588 = vld [vmem:[%s579 + $0x90] sm:$0xff]
  %v589 = vld [vmem:[%s579 + $0xa0] sm:$0xff]
  %v590 = vld [vmem:[%s579 + $0xb0] sm:$0xff]
  %v591 = vld [vmem:[%s579 + $0xc0] sm:$0xff]
  %v592 = vld [vmem:[%s579 + $0xd0] sm:$0xff]
  %v593 = vld [vmem:[%s579 + $0xe0] sm:$0xff]
  %v594 = vld [vmem:[%s579 + $0xf0] sm:$0xff]
  %v595 = vld [vmem:[%s579 + $0x100] sm:$0xff]
  %v596 = vpack.c.bf16 %v581, %v580
  %v597 = vpack.c.bf16 %v583, %v582
  %v598 = vpack.c.bf16 %v585, %v584
  %v599 = vpack.c.bf16 %v587, %v586
  %v600 = vpack.c.bf16 %v589, %v588
  %v601 = vpack.c.bf16 %v591, %v590
  %v602 = vpack.c.bf16 %v593, %v592
  %v603 = vpack.c.bf16 %v595, %v594
  %s604 = scalar_lea.vmem %s1, 20
  %v605 = vld [vmem:[%s604] sm:$0x7]
  %v607 = vsel %vm67, %v596, 0
  %v610 = vsel %vm67, %v597, 0
  %v613 = vsel %vm67, %v598, 0
  %v616 = vsel %vm67, %v599, 0
  %v619 = vsel %vm67, %v600, 0
  %v622 = vsel %vm67, %v601, 0
  %v625 = vsel %vm67, %v602, 0
  %v628 = vsel %vm67, %v603, 0
  %v631 = vand.u32 %v605, %v95
  %633 = vmatpush.bf16.msra.mxu0 0
  %634 = vmatpush.bf16.msra.mxu0 0
  %635 = vmatpush.bf16.msra.mxu0 0
  %636 = vmatpush.bf16.msra.mxu0 0
  %637 = vmatpush.bf16.msra.mxu0 0
  %638 = vmatpush.bf16.msra.mxu0 0
  %639 = vmatpush.bf16.msra.mxu0 0
  %640 = vmatpush.bf16.msra.mxu0 %v631
  %641 = vmatmul.bf16.gmra.mxu0 %v607
  %v642 = vpop.f32.mrf.mxu0
  %v643 = vadd.f32 0.0, %v642
  %v644 = vpop.f32.mrf.mxu0
  %v645 = vadd.f32 0.0, %v644
  %646 = vmatmul.bf16.gmra.mxu0 %v610
  %v647 = vpop.f32.mrf.mxu0
  %v648 = vadd.f32 0.0, %v647
  %v649 = vpop.f32.mrf.mxu0
  %v650 = vadd.f32 0.0, %v649
  %651 = vmatmul.bf16.gmra.mxu0 %v613
  %v652 = vpop.f32.mrf.mxu0
  %v653 = vadd.f32 0.0, %v652
  %v654 = vpop.f32.mrf.mxu0
  %v655 = vadd.f32 0.0, %v654
  %656 = vmatmul.bf16.gmra.mxu0 %v616
  %v657 = vpop.f32.mrf.mxu0
  %v658 = vadd.f32 0.0, %v657
  %v659 = vpop.f32.mrf.mxu0
  %v660 = vadd.f32 0.0, %v659
  %661 = vmatmul.bf16.gmra.mxu0 %v619
  %v662 = vpop.f32.mrf.mxu0
  %v663 = vadd.f32 0.0, %v662
  %v664 = vpop.f32.mrf.mxu0
  %v665 = vadd.f32 0.0, %v664
  %666 = vmatmul.bf16.gmra.mxu0 %v622
  %v667 = vpop.f32.mrf.mxu0
  %v668 = vadd.f32 0.0, %v667
  %v669 = vpop.f32.mrf.mxu0
  %v670 = vadd.f32 0.0, %v669
  %671 = vmatmul.bf16.gmra.mxu0 %v625
  %v672 = vpop.f32.mrf.mxu0
  %v673 = vadd.f32 0.0, %v672
  %v674 = vpop.f32.mrf.mxu0
  %v675 = vadd.f32 0.0, %v674
  %676 = vmatmul.bf16.gmra.mxu0 %v628
  %v677 = vpop.f32.mrf.mxu0
  %v678 = vadd.f32 0.0, %v677
  %v679 = vpop.f32.mrf.mxu0
  %v680 = vadd.f32 0.0, %v679
  %681 = vdwg.mxu0
  %v682 = vadd.f32 %v563, %v643
  %v683 = vadd.f32 %v564, %v645
  %v684 = vadd.f32 %v565, %v648
  %v685 = vadd.f32 %v566, %v650
  %v686 = vadd.f32 %v567, %v653
  %v687 = vadd.f32 %v568, %v655
  %v688 = vadd.f32 %v569, %v658
  %v689 = vadd.f32 %v570, %v660
  %v690 = vadd.f32 %v571, %v663
  %v691 = vadd.f32 %v572, %v665
  %v692 = vadd.f32 %v573, %v668
  %v693 = vadd.f32 %v574, %v670
  %v694 = vadd.f32 %v575, %v673
  %v695 = vadd.f32 %v576, %v675
  %v696 = vadd.f32 %v577, %v678
  %v697 = vadd.f32 %v578, %v680
  %v698 = vld [vmem:[%s460 + $0x1] sm:$0xff]
  %v699 = vld [vmem:[%s460 + $0x11] sm:$0xff]
  %v700 = vld [vmem:[%s460 + $0x21] sm:$0xff]
  %v701 = vld [vmem:[%s460 + $0x31] sm:$0xff]
  %v702 = vld [vmem:[%s460 + $0x41] sm:$0xff]
  %v703 = vld [vmem:[%s460 + $0x51] sm:$0xff]
  %v704 = vld [vmem:[%s460 + $0x61] sm:$0xff]
  %v705 = vld [vmem:[%s460 + $0x71] sm:$0xff]
  %v706 = vld [vmem:[%s460 + $0x91] sm:$0xff]
  %v707 = vld [vmem:[%s460 + $0xa1] sm:$0xff]
  %v708 = vld [vmem:[%s460 + $0xb1] sm:$0xff]
  %v709 = vld [vmem:[%s460 + $0xc1] sm:$0xff]
  %v710 = vld [vmem:[%s460 + $0xd1] sm:$0xff]
  %v711 = vld [vmem:[%s460 + $0xe1] sm:$0xff]
  %v712 = vld [vmem:[%s460 + $0xf1] sm:$0xff]
  %v713 = vld [vmem:[%s460 + $0x101] sm:$0xff]
  %v714 = vpack.c.bf16 %v699, %v698
  %v715 = vpack.c.bf16 %v701, %v700
  %v716 = vpack.c.bf16 %v703, %v702
  %v717 = vpack.c.bf16 %v705, %v704
  %v718 = vpack.c.bf16 %v707, %v706
  %v719 = vpack.c.bf16 %v709, %v708
  %v720 = vpack.c.bf16 %v711, %v710
  %v721 = vpack.c.bf16 %v713, %v712
  %s722 = scalar_lea.vmem %s1, 24
  %v723 = vld [vmem:[%s722] sm:$0x7]
  %v725 = vsel %vm67, %v714, 0
  %v728 = vsel %vm67, %v715, 0
  %v731 = vsel %vm67, %v716, 0
  %v734 = vsel %vm67, %v717, 0
  %v737 = vsel %vm67, %v718, 0
  %v740 = vsel %vm67, %v719, 0
  %v743 = vsel %vm67, %v720, 0
  %v746 = vsel %vm67, %v721, 0
  %v749 = vand.u32 %v723, %v95
  %751 = vmatpush.bf16.msra.mxu0 0
  %752 = vmatpush.bf16.msra.mxu0 0
  %753 = vmatpush.bf16.msra.mxu0 0
  %754 = vmatpush.bf16.msra.mxu0 0
  %755 = vmatpush.bf16.msra.mxu0 0
  %756 = vmatpush.bf16.msra.mxu0 0
  %757 = vmatpush.bf16.msra.mxu0 0
  %758 = vmatpush.bf16.msra.mxu0 %v749
  %759 = vmatmul.bf16.gmra.mxu0 %v725
  %v760 = vpop.f32.mrf.mxu0
  %v761 = vadd.f32 0.0, %v760
  %v762 = vpop.f32.mrf.mxu0
  %v763 = vadd.f32 0.0, %v762
  %764 = vmatmul.bf16.gmra.mxu0 %v728
  %v765 = vpop.f32.mrf.mxu0
  %v766 = vadd.f32 0.0, %v765
  %v767 = vpop.f32.mrf.mxu0
  %v768 = vadd.f32 0.0, %v767
  %769 = vmatmul.bf16.gmra.mxu0 %v731
  %v770 = vpop.f32.mrf.mxu0
  %v771 = vadd.f32 0.0, %v770
  %v772 = vpop.f32.mrf.mxu0
  %v773 = vadd.f32 0.0, %v772
  %774 = vmatmul.bf16.gmra.mxu0 %v734
  %v775 = vpop.f32.mrf.mxu0
  %v776 = vadd.f32 0.0, %v775
  %v777 = vpop.f32.mrf.mxu0
  %v778 = vadd.f32 0.0, %v777
  %779 = vmatmul.bf16.gmra.mxu0 %v737
  %v780 = vpop.f32.mrf.mxu0
  %v781 = vadd.f32 0.0, %v780
  %v782 = vpop.f32.mrf.mxu0
  %v783 = vadd.f32 0.0, %v782
  %784 = vmatmul.bf16.gmra.mxu0 %v740
  %v785 = vpop.f32.mrf.mxu0
  %v786 = vadd.f32 0.0, %v785
  %v787 = vpop.f32.mrf.mxu0
  %v788 = vadd.f32 0.0, %v787
  %789 = vmatmul.bf16.gmra.mxu0 %v743
  %v790 = vpop.f32.mrf.mxu0
  %v791 = vadd.f32 0.0, %v790
  %v792 = vpop.f32.mrf.mxu0
  %v793 = vadd.f32 0.0, %v792
  %794 = vmatmul.bf16.gmra.mxu0 %v746
  %v795 = vpop.f32.mrf.mxu0
  %v796 = vadd.f32 0.0, %v795
  %v797 = vpop.f32.mrf.mxu0
  %v798 = vadd.f32 0.0, %v797
  %799 = vdwg.mxu0
  %v800 = vadd.f32 %v682, %v761
  %v801 = vadd.f32 %v683, %v763
  %v802 = vadd.f32 %v684, %v766
  %v803 = vadd.f32 %v685, %v768
  %v804 = vadd.f32 %v686, %v771
  %v805 = vadd.f32 %v687, %v773
  %v806 = vadd.f32 %v688, %v776
  %v807 = vadd.f32 %v689, %v778
  %v808 = vadd.f32 %v690, %v781
  %v809 = vadd.f32 %v691, %v783
  %v810 = vadd.f32 %v692, %v786
  %v811 = vadd.f32 %v693, %v788
  %v812 = vadd.f32 %v694, %v791
  %v813 = vadd.f32 %v695, %v793
  %v814 = vadd.f32 %v696, %v796
  %v815 = vadd.f32 %v697, %v798
  %v816 = vld [vmem:[%s579 + $0x1] sm:$0xff]
  %v817 = vld [vmem:[%s579 + $0x11] sm:$0xff]
  %v818 = vld [vmem:[%s579 + $0x21] sm:$0xff]
  %v819 = vld [vmem:[%s579 + $0x31] sm:$0xff]
  %v820 = vld [vmem:[%s579 + $0x41] sm:$0xff]
  %v821 = vld [vmem:[%s579 + $0x51] sm:$0xff]
  %v822 = vld [vmem:[%s579 + $0x61] sm:$0xff]
  %v823 = vld [vmem:[%s579 + $0x71] sm:$0xff]
  %v824 = vld [vmem:[%s579 + $0x91] sm:$0xff]
  %v825 = vld [vmem:[%s579 + $0xa1] sm:$0xff]
  %v826 = vld [vmem:[%s579 + $0xb1] sm:$0xff]
  %v827 = vld [vmem:[%s579 + $0xc1] sm:$0xff]
  %v828 = vld [vmem:[%s579 + $0xd1] sm:$0xff]
  %v829 = vld [vmem:[%s579 + $0xe1] sm:$0xff]
  %v830 = vld [vmem:[%s579 + $0xf1] sm:$0xff]
  %v831 = vld [vmem:[%s579 + $0x101] sm:$0xff]
  %v832 = vpack.c.bf16 %v817, %v816
  %v833 = vpack.c.bf16 %v819, %v818
  %v834 = vpack.c.bf16 %v821, %v820
  %v835 = vpack.c.bf16 %v823, %v822
  %v836 = vpack.c.bf16 %v825, %v824
  %v837 = vpack.c.bf16 %v827, %v826
  %v838 = vpack.c.bf16 %v829, %v828
  %v839 = vpack.c.bf16 %v831, %v830
  %s840 = scalar_lea.vmem %s1, 28
  %v841 = vld [vmem:[%s840] sm:$0x7]
  %v843 = vsel %vm67, %v832, 0
  %v846 = vsel %vm67, %v833, 0
  %v849 = vsel %vm67, %v834, 0
  %v852 = vsel %vm67, %v835, 0
  %v855 = vsel %vm67, %v836, 0
  %v858 = vsel %vm67, %v837, 0
  %v861 = vsel %vm67, %v838, 0
  %v864 = vsel %vm67, %v839, 0
  %v867 = vand.u32 %v841, %v95
  %869 = vmatpush.bf16.msra.mxu0 0
  %870 = vmatpush.bf16.msra.mxu0 0
  %871 = vmatpush.bf16.msra.mxu0 0
  %872 = vmatpush.bf16.msra.mxu0 0
  %873 = vmatpush.bf16.msra.mxu0 0
  %874 = vmatpush.bf16.msra.mxu0 0
  %875 = vmatpush.bf16.msra.mxu0 0
  %876 = vmatpush.bf16.msra.mxu0 %v867
  %877 = vmatmul.bf16.gmra.mxu0 %v843
  %v878 = vpop.f32.mrf.mxu0
  %v879 = vadd.f32 0.0, %v878
  %v880 = vpop.f32.mrf.mxu0
  %v881 = vadd.f32 0.0, %v880
  %882 = vmatmul.bf16.gmra.mxu0 %v846
  %v883 = vpop.f32.mrf.mxu0
  %v884 = vadd.f32 0.0, %v883
  %v885 = vpop.f32.mrf.mxu0
  %v886 = vadd.f32 0.0, %v885
  %887 = vmatmul.bf16.gmra.mxu0 %v849
  %v888 = vpop.f32.mrf.mxu0
  %v889 = vadd.f32 0.0, %v888
  %v890 = vpop.f32.mrf.mxu0
  %v891 = vadd.f32 0.0, %v890
  %892 = vmatmul.bf16.gmra.mxu0 %v852
  %v893 = vpop.f32.mrf.mxu0
  %v894 = vadd.f32 0.0, %v893
  %v895 = vpop.f32.mrf.mxu0
  %v896 = vadd.f32 0.0, %v895
  %897 = vmatmul.bf16.gmra.mxu0 %v855
  %v898 = vpop.f32.mrf.mxu0
  %v899 = vadd.f32 0.0, %v898
  %v900 = vpop.f32.mrf.mxu0
  %v901 = vadd.f32 0.0, %v900
  %902 = vmatmul.bf16.gmra.mxu0 %v858
  %v903 = vpop.f32.mrf.mxu0
  %v904 = vadd.f32 0.0, %v903
  %v905 = vpop.f32.mrf.mxu0
  %v906 = vadd.f32 0.0, %v905
  %907 = vmatmul.bf16.gmra.mxu0 %v861
  %v908 = vpop.f32.mrf.mxu0
  %v909 = vadd.f32 0.0, %v908
  %v910 = vpop.f32.mrf.mxu0
  %v911 = vadd.f32 0.0, %v910
  %912 = vmatmul.bf16.gmra.mxu0 %v864
  %v913 = vpop.f32.mrf.mxu0
  %v914 = vadd.f32 0.0, %v913
  %v915 = vpop.f32.mrf.mxu0
  %v916 = vadd.f32 0.0, %v915
  %917 = vdwg.mxu0
  %v918 = vadd.f32 %v800, %v879
  %v919 = vadd.f32 %v801, %v881
  %v920 = vadd.f32 %v802, %v884
  %v921 = vadd.f32 %v803, %v886
  %v922 = vadd.f32 %v804, %v889
  %v923 = vadd.f32 %v805, %v891
  %v924 = vadd.f32 %v806, %v894
  %v925 = vadd.f32 %v807, %v896
  %v926 = vadd.f32 %v808, %v899
  %v927 = vadd.f32 %v809, %v901
  %v928 = vadd.f32 %v810, %v904
  %v929 = vadd.f32 %v811, %v906
  %v930 = vadd.f32 %v812, %v909
  %v931 = vadd.f32 %v813, %v911
  %v932 = vadd.f32 %v814, %v914
  %v933 = vadd.f32 %v815, %v916
  %s934 = scalar_lea.vmem %s0, 16
  %v935 = vld [vmem:[%s934] sm:$0xff]
  %v936 = vld [vmem:[%s934 + $0x10] sm:$0xff]
  %v937 = vld [vmem:[%s934 + $0x20] sm:$0xff]
  %v938 = vld [vmem:[%s934 + $0x30] sm:$0xff]
  %v939 = vld [vmem:[%s934 + $0x40] sm:$0xff]
  %v940 = vld [vmem:[%s934 + $0x50] sm:$0xff]
  %v941 = vld [vmem:[%s934 + $0x60] sm:$0xff]
  %v942 = vld [vmem:[%s934 + $0x70] sm:$0xff]
  %v943 = vld [vmem:[%s934 + $0x90] sm:$0xff]
  %v944 = vld [vmem:[%s934 + $0xa0] sm:$0xff]
  %v945 = vld [vmem:[%s934 + $0xb0] sm:$0xff]
  %v946 = vld [vmem:[%s934 + $0xc0] sm:$0xff]
  %v947 = vld [vmem:[%s934 + $0xd0] sm:$0xff]
  %v948 = vld [vmem:[%s934 + $0xe0] sm:$0xff]
  %v949 = vld [vmem:[%s934 + $0xf0] sm:$0xff]
  %v950 = vld [vmem:[%s934 + $0x100] sm:$0xff]
  %v951 = vpack.c.bf16 %v936, %v935
  %v952 = vpack.c.bf16 %v938, %v937
  %v953 = vpack.c.bf16 %v940, %v939
  %v954 = vpack.c.bf16 %v942, %v941
  %v955 = vpack.c.bf16 %v944, %v943
  %v956 = vpack.c.bf16 %v946, %v945
  %v957 = vpack.c.bf16 %v948, %v947
  %v958 = vpack.c.bf16 %v950, %v949
  %s959 = scalar_lea.vmem %s1, 32
  %v960 = vld [vmem:[%s959] sm:$0x7]
  %v962 = vsel %vm67, %v951, 0
  %v965 = vsel %vm67, %v952, 0
  %v968 = vsel %vm67, %v953, 0
  %v971 = vsel %vm67, %v954, 0
  %v974 = vsel %vm67, %v955, 0
  %v977 = vsel %vm67, %v956, 0
  %v980 = vsel %vm67, %v957, 0
  %v983 = vsel %vm67, %v958, 0
  %v986 = vand.u32 %v960, %v95
  %988 = vmatpush.bf16.msra.mxu0 0
  %989 = vmatpush.bf16.msra.mxu0 0
  %990 = vmatpush.bf16.msra.mxu0 0
  %991 = vmatpush.bf16.msra.mxu0 0
  %992 = vmatpush.bf16.msra.mxu0 0
  %993 = vmatpush.bf16.msra.mxu0 0
  %994 = vmatpush.bf16.msra.mxu0 0
  %995 = vmatpush.bf16.msra.mxu0 %v986
  %996 = vmatmul.bf16.gmra.mxu0 %v962
  %v997 = vpop.f32.mrf.mxu0
  %v998 = vadd.f32 0.0, %v997
  %v999 = vpop.f32.mrf.mxu0
  %v1000 = vadd.f32 0.0, %v999
  %1001 = vmatmul.bf16.gmra.mxu0 %v965
  %v1002 = vpop.f32.mrf.mxu0
  %v1003 = vadd.f32 0.0, %v1002
  %v1004 = vpop.f32.mrf.mxu0
  %v1005 = vadd.f32 0.0, %v1004
  %1006 = vmatmul.bf16.gmra.mxu0 %v968
  %v1007 = vpop.f32.mrf.mxu0
  %v1008 = vadd.f32 0.0, %v1007
  %v1009 = vpop.f32.mrf.mxu0
  %v1010 = vadd.f32 0.0, %v1009
  %1011 = vmatmul.bf16.gmra.mxu0 %v971
  %v1012 = vpop.f32.mrf.mxu0
  %v1013 = vadd.f32 0.0, %v1012
  %v1014 = vpop.f32.mrf.mxu0
  %v1015 = vadd.f32 0.0, %v1014
  %1016 = vmatmul.bf16.gmra.mxu0 %v974
  %v1017 = vpop.f32.mrf.mxu0
  %v1018 = vadd.f32 0.0, %v1017
  %v1019 = vpop.f32.mrf.mxu0
  %v1020 = vadd.f32 0.0, %v1019
  %1021 = vmatmul.bf16.gmra.mxu0 %v977
  %v1022 = vpop.f32.mrf.mxu0
  %v1023 = vadd.f32 0.0, %v1022
  %v1024 = vpop.f32.mrf.mxu0
  %v1025 = vadd.f32 0.0, %v1024
  %1026 = vmatmul.bf16.gmra.mxu0 %v980
  %v1027 = vpop.f32.mrf.mxu0
  %v1028 = vadd.f32 0.0, %v1027
  %v1029 = vpop.f32.mrf.mxu0
  %v1030 = vadd.f32 0.0, %v1029
  %1031 = vmatmul.bf16.gmra.mxu0 %v983
  %v1032 = vpop.f32.mrf.mxu0
  %v1033 = vadd.f32 0.0, %v1032
  %v1034 = vpop.f32.mrf.mxu0
  %v1035 = vadd.f32 0.0, %v1034
  %1036 = vdwg.mxu0
  %v1037 = vadd.f32 %v918, %v998
  %v1038 = vadd.f32 %v919, %v1000
  %v1039 = vadd.f32 %v920, %v1003
  %v1040 = vadd.f32 %v921, %v1005
  %v1041 = vadd.f32 %v922, %v1008
  %v1042 = vadd.f32 %v923, %v1010
  %v1043 = vadd.f32 %v924, %v1013
  %v1044 = vadd.f32 %v925, %v1015
  %v1045 = vadd.f32 %v926, %v1018
  %v1046 = vadd.f32 %v927, %v1020
  %v1047 = vadd.f32 %v928, %v1023
  %v1048 = vadd.f32 %v929, %v1025
  %v1049 = vadd.f32 %v930, %v1028
  %v1050 = vadd.f32 %v931, %v1030
  %v1051 = vadd.f32 %v932, %v1033
  %v1052 = vadd.f32 %v933, %v1035
  %s1053 = scalar_lea.vmem %s0, 304
  %v1054 = vld [vmem:[%s1053] sm:$0xff]
  %v1055 = vld [vmem:[%s1053 + $0x10] sm:$0xff]
  %v1056 = vld [vmem:[%s1053 + $0x20] sm:$0xff]
  %v1057 = vld [vmem:[%s1053 + $0x30] sm:$0xff]
  %v1058 = vld [vmem:[%s1053 + $0x40] sm:$0xff]
  %v1059 = vld [vmem:[%s1053 + $0x50] sm:$0xff]
  %v1060 = vld [vmem:[%s1053 + $0x60] sm:$0xff]
  %v1061 = vld [vmem:[%s1053 + $0x70] sm:$0xff]
  %v1062 = vld [vmem:[%s1053 + $0x90] sm:$0xff]
  %v1063 = vld [vmem:[%s1053 + $0xa0] sm:$0xff]
  %v1064 = vld [vmem:[%s1053 + $0xb0] sm:$0xff]
  %v1065 = vld [vmem:[%s1053 + $0xc0] sm:$0xff]
  %v1066 = vld [vmem:[%s1053 + $0xd0] sm:$0xff]
  %v1067 = vld [vmem:[%s1053 + $0xe0] sm:$0xff]
  %v1068 = vld [vmem:[%s1053 + $0xf0] sm:$0xff]
  %v1069 = vld [vmem:[%s1053 + $0x100] sm:$0xff]
  %v1070 = vpack.c.bf16 %v1055, %v1054
  %v1071 = vpack.c.bf16 %v1057, %v1056
  %v1072 = vpack.c.bf16 %v1059, %v1058
  %v1073 = vpack.c.bf16 %v1061, %v1060
  %v1074 = vpack.c.bf16 %v1063, %v1062
  %v1075 = vpack.c.bf16 %v1065, %v1064
  %v1076 = vpack.c.bf16 %v1067, %v1066
  %v1077 = vpack.c.bf16 %v1069, %v1068
  %s1078 = scalar_lea.vmem %s1, 36
  %v1079 = vld [vmem:[%s1078] sm:$0x7]
  %v1081 = vsel %vm67, %v1070, 0
  %v1084 = vsel %vm67, %v1071, 0
  %v1087 = vsel %vm67, %v1072, 0
  %v1090 = vsel %vm67, %v1073, 0
  %v1093 = vsel %vm67, %v1074, 0
  %v1096 = vsel %vm67, %v1075, 0
  %v1099 = vsel %vm67, %v1076, 0
  %v1102 = vsel %vm67, %v1077, 0
  %v1105 = vand.u32 %v1079, %v95
  %1107 = vmatpush.bf16.msra.mxu0 0
  %1108 = vmatpush.bf16.msra.mxu0 0
  %1109 = vmatpush.bf16.msra.mxu0 0
  %1110 = vmatpush.bf16.msra.mxu0 0
  %1111 = vmatpush.bf16.msra.mxu0 0
  %1112 = vmatpush.bf16.msra.mxu0 0
  %1113 = vmatpush.bf16.msra.mxu0 0
  %1114 = vmatpush.bf16.msra.mxu0 %v1105
  %1115 = vmatmul.bf16.gmra.mxu0 %v1081
  %v1116 = vpop.f32.mrf.mxu0
  %v1117 = vadd.f32 0.0, %v1116
  %v1118 = vpop.f32.mrf.mxu0
  %v1119 = vadd.f32 0.0, %v1118
  %1120 = vmatmul.bf16.gmra.mxu0 %v1084
  %v1121 = vpop.f32.mrf.mxu0
  %v1122 = vadd.f32 0.0, %v1121
  %v1123 = vpop.f32.mrf.mxu0
  %v1124 = vadd.f32 0.0, %v1123
  %1125 = vmatmul.bf16.gmra.mxu0 %v1087
  %v1126 = vpop.f32.mrf.mxu0
  %v1127 = vadd.f32 0.0, %v1126
  %v1128 = vpop.f32.mrf.mxu0
  %v1129 = vadd.f32 0.0, %v1128
  %1130 = vmatmul.bf16.gmra.mxu0 %v1090
  %v1131 = vpop.f32.mrf.mxu0
  %v1132 = vadd.f32 0.0, %v1131
  %v1133 = vpop.f32.mrf.mxu0
  %v1134 = vadd.f32 0.0, %v1133
  %1135 = vmatmul.bf16.gmra.mxu0 %v1093
  %v1136 = vpop.f32.mrf.mxu0
  %v1137 = vadd.f32 0.0, %v1136
  %v1138 = vpop.f32.mrf.mxu0
  %v1139 = vadd.f32 0.0, %v1138
  %1140 = vmatmul.bf16.gmra.mxu0 %v1096
  %v1141 = vpop.f32.mrf.mxu0
  %v1142 = vadd.f32 0.0, %v1141
  %v1143 = vpop.f32.mrf.mxu0
  %v1144 = vadd.f32 0.0, %v1143
  %1145 = vmatmul.bf16.gmra.mxu0 %v1099
  %v1146 = vpop.f32.mrf.mxu0
  %v1147 = vadd.f32 0.0, %v1146
  %v1148 = vpop.f32.mrf.mxu0
  %v1149 = vadd.f32 0.0, %v1148
  %1150 = vmatmul.bf16.gmra.mxu0 %v1102
  %v1151 = vpop.f32.mrf.mxu0
  %v1152 = vadd.f32 0.0, %v1151
  %v1153 = vpop.f32.mrf.mxu0
  %v1154 = vadd.f32 0.0, %v1153
  %1155 = vdwg.mxu0
  %v1156 = vadd.f32 %v1037, %v1117
  %v1157 = vadd.f32 %v1038, %v1119
  %v1158 = vadd.f32 %v1039, %v1122
  %v1159 = vadd.f32 %v1040, %v1124
  %v1160 = vadd.f32 %v1041, %v1127
  %v1161 = vadd.f32 %v1042, %v1129
  %v1162 = vadd.f32 %v1043, %v1132
  %v1163 = vadd.f32 %v1044, %v1134
  %v1164 = vadd.f32 %v1045, %v1137
  %v1165 = vadd.f32 %v1046, %v1139
  %v1166 = vadd.f32 %v1047, %v1142
  %v1167 = vadd.f32 %v1048, %v1144
  %v1168 = vadd.f32 %v1049, %v1147
  %v1169 = vadd.f32 %v1050, %v1149
  %v1170 = vadd.f32 %v1051, %v1152
  %v1171 = vadd.f32 %v1052, %v1154
  %v1172 = vld [vmem:[%s934 + $0x1] sm:$0xff]
  %v1173 = vld [vmem:[%s934 + $0x11] sm:$0xff]
  %v1174 = vld [vmem:[%s934 + $0x21] sm:$0xff]
  %v1175 = vld [vmem:[%s934 + $0x31] sm:$0xff]
  %v1176 = vld [vmem:[%s934 + $0x41] sm:$0xff]
  %v1177 = vld [vmem:[%s934 + $0x51] sm:$0xff]
  %v1178 = vld [vmem:[%s934 + $0x61] sm:$0xff]
  %v1179 = vld [vmem:[%s934 + $0x71] sm:$0xff]
  %v1180 = vld [vmem:[%s934 + $0x91] sm:$0xff]
  %v1181 = vld [vmem:[%s934 + $0xa1] sm:$0xff]
  %v1182 = vld [vmem:[%s934 + $0xb1] sm:$0xff]
  %v1183 = vld [vmem:[%s934 + $0xc1] sm:$0xff]
  %v1184 = vld [vmem:[%s934 + $0xd1] sm:$0xff]
  %v1185 = vld [vmem:[%s934 + $0xe1] sm:$0xff]
  %v1186 = vld [vmem:[%s934 + $0xf1] sm:$0xff]
  %v1187 = vld [vmem:[%s934 + $0x101] sm:$0xff]
  %v1188 = vpack.c.bf16 %v1173, %v1172
  %v1189 = vpack.c.bf16 %v1175, %v1174
  %v1190 = vpack.c.bf16 %v1177, %v1176
  %v1191 = vpack.c.bf16 %v1179, %v1178
  %v1192 = vpack.c.bf16 %v1181, %v1180
  %v1193 = vpack.c.bf16 %v1183, %v1182
  %v1194 = vpack.c.bf16 %v1185, %v1184
  %v1195 = vpack.c.bf16 %v1187, %v1186
  %s1196 = scalar_lea.vmem %s1, 40
  %v1197 = vld [vmem:[%s1196] sm:$0x7]
  %v1199 = vsel %vm67, %v1188, 0
  %v1202 = vsel %vm67, %v1189, 0
  %v1205 = vsel %vm67, %v1190, 0
  %v1208 = vsel %vm67, %v1191, 0
  %v1211 = vsel %vm67, %v1192, 0
  %v1214 = vsel %vm67, %v1193, 0
  %v1217 = vsel %vm67, %v1194, 0
  %v1220 = vsel %vm67, %v1195, 0
  %v1223 = vand.u32 %v1197, %v95
  %1225 = vmatpush.bf16.msra.mxu0 0
  %1226 = vmatpush.bf16.msra.mxu0 0
  %1227 = vmatpush.bf16.msra.mxu0 0
  %1228 = vmatpush.bf16.msra.mxu0 0
  %1229 = vmatpush.bf16.msra.mxu0 0
  %1230 = vmatpush.bf16.msra.mxu0 0
  %1231 = vmatpush.bf16.msra.mxu0 0
  %1232 = vmatpush.bf16.msra.mxu0 %v1223
  %1233 = vmatmul.bf16.gmra.mxu0 %v1199
  %v1234 = vpop.f32.mrf.mxu0
  %v1235 = vadd.f32 0.0, %v1234
  %v1236 = vpop.f32.mrf.mxu0
  %v1237 = vadd.f32 0.0, %v1236
  %1238 = vmatmul.bf16.gmra.mxu0 %v1202
  %v1239 = vpop.f32.mrf.mxu0
  %v1240 = vadd.f32 0.0, %v1239
  %v1241 = vpop.f32.mrf.mxu0
  %v1242 = vadd.f32 0.0, %v1241
  %1243 = vmatmul.bf16.gmra.mxu0 %v1205
  %v1244 = vpop.f32.mrf.mxu0
  %v1245 = vadd.f32 0.0, %v1244
  %v1246 = vpop.f32.mrf.mxu0
  %v1247 = vadd.f32 0.0, %v1246
  %1248 = vmatmul.bf16.gmra.mxu0 %v1208
  %v1249 = vpop.f32.mrf.mxu0
  %v1250 = vadd.f32 0.0, %v1249
  %v1251 = vpop.f32.mrf.mxu0
  %v1252 = vadd.f32 0.0, %v1251
  %1253 = vmatmul.bf16.gmra.mxu0 %v1211
  %v1254 = vpop.f32.mrf.mxu0
  %v1255 = vadd.f32 0.0, %v1254
  %v1256 = vpop.f32.mrf.mxu0
  %v1257 = vadd.f32 0.0, %v1256
  %1258 = vmatmul.bf16.gmra.mxu0 %v1214
  %v1259 = vpop.f32.mrf.mxu0
  %v1260 = vadd.f32 0.0, %v1259
  %v1261 = vpop.f32.mrf.mxu0
  %v1262 = vadd.f32 0.0, %v1261
  %1263 = vmatmul.bf16.gmra.mxu0 %v1217
  %v1264 = vpop.f32.mrf.mxu0
  %v1265 = vadd.f32 0.0, %v1264
  %v1266 = vpop.f32.mrf.mxu0
  %v1267 = vadd.f32 0.0, %v1266
  %1268 = vmatmul.bf16.gmra.mxu0 %v1220
  %v1269 = vpop.f32.mrf.mxu0
  %v1270 = vadd.f32 0.0, %v1269
  %v1271 = vpop.f32.mrf.mxu0
  %v1272 = vadd.f32 0.0, %v1271
  %1273 = vdwg.mxu0
  %v1274 = vadd.f32 %v1156, %v1235
  %v1275 = vadd.f32 %v1157, %v1237
  %v1276 = vadd.f32 %v1158, %v1240
  %v1277 = vadd.f32 %v1159, %v1242
  %v1278 = vadd.f32 %v1160, %v1245
  %v1279 = vadd.f32 %v1161, %v1247
  %v1280 = vadd.f32 %v1162, %v1250
  %v1281 = vadd.f32 %v1163, %v1252
  %v1282 = vadd.f32 %v1164, %v1255
  %v1283 = vadd.f32 %v1165, %v1257
  %v1284 = vadd.f32 %v1166, %v1260
  %v1285 = vadd.f32 %v1167, %v1262
  %v1286 = vadd.f32 %v1168, %v1265
  %v1287 = vadd.f32 %v1169, %v1267
  %v1288 = vadd.f32 %v1170, %v1270
  %v1289 = vadd.f32 %v1171, %v1272
  %v1290 = vld [vmem:[%s1053 + $0x1] sm:$0xff]
  %v1291 = vld [vmem:[%s1053 + $0x11] sm:$0xff]
  %v1292 = vld [vmem:[%s1053 + $0x21] sm:$0xff]
  %v1293 = vld [vmem:[%s1053 + $0x31] sm:$0xff]
  %v1294 = vld [vmem:[%s1053 + $0x41] sm:$0xff]
  %v1295 = vld [vmem:[%s1053 + $0x51] sm:$0xff]
  %v1296 = vld [vmem:[%s1053 + $0x61] sm:$0xff]
  %v1297 = vld [vmem:[%s1053 + $0x71] sm:$0xff]
  %v1298 = vld [vmem:[%s1053 + $0x91] sm:$0xff]
  %v1299 = vld [vmem:[%s1053 + $0xa1] sm:$0xff]
  %v1300 = vld [vmem:[%s1053 + $0xb1] sm:$0xff]
  %v1301 = vld [vmem:[%s1053 + $0xc1] sm:$0xff]
  %v1302 = vld [vmem:[%s1053 + $0xd1] sm:$0xff]
  %v1303 = vld [vmem:[%s1053 + $0xe1] sm:$0xff]
  %v1304 = vld [vmem:[%s1053 + $0xf1] sm:$0xff]
  %v1305 = vld [vmem:[%s1053 + $0x101] sm:$0xff]
  %v1306 = vpack.c.bf16 %v1291, %v1290
  %v1307 = vpack.c.bf16 %v1293, %v1292
  %v1308 = vpack.c.bf16 %v1295, %v1294
  %v1309 = vpack.c.bf16 %v1297, %v1296
  %v1310 = vpack.c.bf16 %v1299, %v1298
  %v1311 = vpack.c.bf16 %v1301, %v1300
  %v1312 = vpack.c.bf16 %v1303, %v1302
  %v1313 = vpack.c.bf16 %v1305, %v1304
  %s1314 = scalar_lea.vmem %s1, 44
  %v1315 = vld [vmem:[%s1314] sm:$0x7]
  %v1317 = vsel %vm67, %v1306, 0
  %v1320 = vsel %vm67, %v1307, 0
  %v1323 = vsel %vm67, %v1308, 0
  %v1326 = vsel %vm67, %v1309, 0
  %v1329 = vsel %vm67, %v1310, 0
  %v1332 = vsel %vm67, %v1311, 0
  %v1335 = vsel %vm67, %v1312, 0
  %v1338 = vsel %vm67, %v1313, 0
  %v1341 = vand.u32 %v1315, %v95
  %1343 = vmatpush.bf16.msra.mxu0 0
  %1344 = vmatpush.bf16.msra.mxu0 0
  %1345 = vmatpush.bf16.msra.mxu0 0
  %1346 = vmatpush.bf16.msra.mxu0 0
  %1347 = vmatpush.bf16.msra.mxu0 0
  %1348 = vmatpush.bf16.msra.mxu0 0
  %1349 = vmatpush.bf16.msra.mxu0 0
  %1350 = vmatpush.bf16.msra.mxu0 %v1341
  %1351 = vmatmul.bf16.gmra.mxu0 %v1317
  %v1352 = vpop.f32.mrf.mxu0
  %v1353 = vadd.f32 0.0, %v1352
  %v1354 = vpop.f32.mrf.mxu0
  %v1355 = vadd.f32 0.0, %v1354
  %1356 = vmatmul.bf16.gmra.mxu0 %v1320
  %v1357 = vpop.f32.mrf.mxu0
  %v1358 = vadd.f32 0.0, %v1357
  %v1359 = vpop.f32.mrf.mxu0
  %v1360 = vadd.f32 0.0, %v1359
  %1361 = vmatmul.bf16.gmra.mxu0 %v1323
  %v1362 = vpop.f32.mrf.mxu0
  %v1363 = vadd.f32 0.0, %v1362
  %v1364 = vpop.f32.mrf.mxu0
  %v1365 = vadd.f32 0.0, %v1364
  %1366 = vmatmul.bf16.gmra.mxu0 %v1326
  %v1367 = vpop.f32.mrf.mxu0
  %v1368 = vadd.f32 0.0, %v1367
  %v1369 = vpop.f32.mrf.mxu0
  %v1370 = vadd.f32 0.0, %v1369
  %1371 = vmatmul.bf16.gmra.mxu0 %v1329
  %v1372 = vpop.f32.mrf.mxu0
  %v1373 = vadd.f32 0.0, %v1372
  %v1374 = vpop.f32.mrf.mxu0
  %v1375 = vadd.f32 0.0, %v1374
  %1376 = vmatmul.bf16.gmra.mxu0 %v1332
  %v1377 = vpop.f32.mrf.mxu0
  %v1378 = vadd.f32 0.0, %v1377
  %v1379 = vpop.f32.mrf.mxu0
  %v1380 = vadd.f32 0.0, %v1379
  %1381 = vmatmul.bf16.gmra.mxu0 %v1335
  %v1382 = vpop.f32.mrf.mxu0
  %v1383 = vadd.f32 0.0, %v1382
  %v1384 = vpop.f32.mrf.mxu0
  %v1385 = vadd.f32 0.0, %v1384
  %1386 = vmatmul.bf16.gmra.mxu0 %v1338
  %v1387 = vpop.f32.mrf.mxu0
  %v1388 = vadd.f32 0.0, %v1387
  %v1389 = vpop.f32.mrf.mxu0
  %v1390 = vadd.f32 0.0, %v1389
  %1391 = vdwg.mxu0
  %v1392 = vadd.f32 %v1274, %v1353
  %v1393 = vadd.f32 %v1275, %v1355
  %v1394 = vadd.f32 %v1276, %v1358
  %v1395 = vadd.f32 %v1277, %v1360
  %v1396 = vadd.f32 %v1278, %v1363
  %v1397 = vadd.f32 %v1279, %v1365
  %v1398 = vadd.f32 %v1280, %v1368
  %v1399 = vadd.f32 %v1281, %v1370
  %v1400 = vadd.f32 %v1282, %v1373
  %v1401 = vadd.f32 %v1283, %v1375
  %v1402 = vadd.f32 %v1284, %v1378
  %v1403 = vadd.f32 %v1285, %v1380
  %v1404 = vadd.f32 %v1286, %v1383
  %v1405 = vadd.f32 %v1287, %v1385
  %v1406 = vadd.f32 %v1288, %v1388
  %v1407 = vadd.f32 %v1289, %v1390
  %s1408 = scalar_lea.vmem %s0, 592
  %v1409 = vld [vmem:[%s1408] sm:$0xff]
  %v1410 = vld [vmem:[%s1408 + $0x10] sm:$0xff]
  %v1411 = vld [vmem:[%s1408 + $0x20] sm:$0xff]
  %v1412 = vld [vmem:[%s1408 + $0x30] sm:$0xff]
  %v1413 = vld [vmem:[%s1408 + $0x40] sm:$0xff]
  %v1414 = vld [vmem:[%s1408 + $0x50] sm:$0xff]
  %v1415 = vld [vmem:[%s1408 + $0x60] sm:$0xff]
  %v1416 = vld [vmem:[%s1408 + $0x70] sm:$0xff]
  %v1417 = vld [vmem:[%s1408 + $0x90] sm:$0xff]
  %v1418 = vld [vmem:[%s1408 + $0xa0] sm:$0xff]
  %v1419 = vld [vmem:[%s1408 + $0xb0] sm:$0xff]
  %v1420 = vld [vmem:[%s1408 + $0xc0] sm:$0xff]
  %v1421 = vld [vmem:[%s1408 + $0xd0] sm:$0xff]
  %v1422 = vld [vmem:[%s1408 + $0xe0] sm:$0xff]
  %v1423 = vld [vmem:[%s1408 + $0xf0] sm:$0xff]
  %v1424 = vld [vmem:[%s1408 + $0x100] sm:$0xff]
  %v1425 = vpack.c.bf16 %v1410, %v1409
  %v1426 = vpack.c.bf16 %v1412, %v1411
  %v1427 = vpack.c.bf16 %v1414, %v1413
  %v1428 = vpack.c.bf16 %v1416, %v1415
  %v1429 = vpack.c.bf16 %v1418, %v1417
  %v1430 = vpack.c.bf16 %v1420, %v1419
  %v1431 = vpack.c.bf16 %v1422, %v1421
  %v1432 = vpack.c.bf16 %v1424, %v1423
  %s1433 = scalar_lea.vmem %s1, 48
  %v1434 = vld [vmem:[%s1433] sm:$0x7]
  %v1436 = vsel %vm67, %v1425, 0
  %v1439 = vsel %vm67, %v1426, 0
  %v1442 = vsel %vm67, %v1427, 0
  %v1445 = vsel %vm67, %v1428, 0
  %v1448 = vsel %vm67, %v1429, 0
  %v1451 = vsel %vm67, %v1430, 0
  %v1454 = vsel %vm67, %v1431, 0
  %v1457 = vsel %vm67, %v1432, 0
  %v1460 = vand.u32 %v1434, %v95
  %1462 = vmatpush.bf16.msra.mxu0 0
  %1463 = vmatpush.bf16.msra.mxu0 0
  %1464 = vmatpush.bf16.msra.mxu0 0
  %1465 = vmatpush.bf16.msra.mxu0 0
  %1466 = vmatpush.bf16.msra.mxu0 0
  %1467 = vmatpush.bf16.msra.mxu0 0
  %1468 = vmatpush.bf16.msra.mxu0 0
  %1469 = vmatpush.bf16.msra.mxu0 %v1460
  %1470 = vmatmul.bf16.gmra.mxu0 %v1436
  %v1471 = vpop.f32.mrf.mxu0
  %v1472 = vadd.f32 0.0, %v1471
  %v1473 = vpop.f32.mrf.mxu0
  %v1474 = vadd.f32 0.0, %v1473
  %1475 = vmatmul.bf16.gmra.mxu0 %v1439
  %v1476 = vpop.f32.mrf.mxu0
  %v1477 = vadd.f32 0.0, %v1476
  %v1478 = vpop.f32.mrf.mxu0
  %v1479 = vadd.f32 0.0, %v1478
  %1480 = vmatmul.bf16.gmra.mxu0 %v1442
  %v1481 = vpop.f32.mrf.mxu0
  %v1482 = vadd.f32 0.0, %v1481
  %v1483 = vpop.f32.mrf.mxu0
  %v1484 = vadd.f32 0.0, %v1483
  %1485 = vmatmul.bf16.gmra.mxu0 %v1445
  %v1486 = vpop.f32.mrf.mxu0
  %v1487 = vadd.f32 0.0, %v1486
  %v1488 = vpop.f32.mrf.mxu0
  %v1489 = vadd.f32 0.0, %v1488
  %1490 = vmatmul.bf16.gmra.mxu0 %v1448
  %v1491 = vpop.f32.mrf.mxu0
  %v1492 = vadd.f32 0.0, %v1491
  %v1493 = vpop.f32.mrf.mxu0
  %v1494 = vadd.f32 0.0, %v1493
  %1495 = vmatmul.bf16.gmra.mxu0 %v1451
  %v1496 = vpop.f32.mrf.mxu0
  %v1497 = vadd.f32 0.0, %v1496
  %v1498 = vpop.f32.mrf.mxu0
  %v1499 = vadd.f32 0.0, %v1498
  %1500 = vmatmul.bf16.gmra.mxu0 %v1454
  %v1501 = vpop.f32.mrf.mxu0
  %v1502 = vadd.f32 0.0, %v1501
  %v1503 = vpop.f32.mrf.mxu0
  %v1504 = vadd.f32 0.0, %v1503
  %1505 = vmatmul.bf16.gmra.mxu0 %v1457
  %v1506 = vpop.f32.mrf.mxu0
  %v1507 = vadd.f32 0.0, %v1506
  %v1508 = vpop.f32.mrf.mxu0
  %v1509 = vadd.f32 0.0, %v1508
  %1510 = vdwg.mxu0
  %v1511 = vadd.f32 %v1392, %v1472
  %v1512 = vadd.f32 %v1393, %v1474
  %v1513 = vadd.f32 %v1394, %v1477
  %v1514 = vadd.f32 %v1395, %v1479
  %v1515 = vadd.f32 %v1396, %v1482
  %v1516 = vadd.f32 %v1397, %v1484
  %v1517 = vadd.f32 %v1398, %v1487
  %v1518 = vadd.f32 %v1399, %v1489
  %v1519 = vadd.f32 %v1400, %v1492
  %v1520 = vadd.f32 %v1401, %v1494
  %v1521 = vadd.f32 %v1402, %v1497
  %v1522 = vadd.f32 %v1403, %v1499
  %v1523 = vadd.f32 %v1404, %v1502
  %v1524 = vadd.f32 %v1405, %v1504
  %v1525 = vadd.f32 %v1406, %v1507
  %v1526 = vadd.f32 %v1407, %v1509
  %s1527 = scalar_lea.vmem %s0, 880
  %v1528 = vld [vmem:[%s1527] sm:$0xff]
  %v1529 = vld [vmem:[%s1527 + $0x10] sm:$0xff]
  %v1530 = vld [vmem:[%s1527 + $0x20] sm:$0xff]
  %v1531 = vld [vmem:[%s1527 + $0x30] sm:$0xff]
  %v1532 = vld [vmem:[%s1527 + $0x40] sm:$0xff]
  %v1533 = vld [vmem:[%s1527 + $0x50] sm:$0xff]
  %v1534 = vld [vmem:[%s1527 + $0x60] sm:$0xff]
  %v1535 = vld [vmem:[%s1527 + $0x70] sm:$0xff]
  %v1536 = vld [vmem:[%s1527 + $0x90] sm:$0xff]
  %v1537 = vld [vmem:[%s1527 + $0xa0] sm:$0xff]
  %v1538 = vld [vmem:[%s1527 + $0xb0] sm:$0xff]
  %v1539 = vld [vmem:[%s1527 + $0xc0] sm:$0xff]
  %v1540 = vld [vmem:[%s1527 + $0xd0] sm:$0xff]
  %v1541 = vld [vmem:[%s1527 + $0xe0] sm:$0xff]
  %v1542 = vld [vmem:[%s1527 + $0xf0] sm:$0xff]
  %v1543 = vld [vmem:[%s1527 + $0x100] sm:$0xff]
  %v1544 = vpack.c.bf16 %v1529, %v1528
  %v1545 = vpack.c.bf16 %v1531, %v1530
  %v1546 = vpack.c.bf16 %v1533, %v1532
  %v1547 = vpack.c.bf16 %v1535, %v1534
  %v1548 = vpack.c.bf16 %v1537, %v1536
  %v1549 = vpack.c.bf16 %v1539, %v1538
  %v1550 = vpack.c.bf16 %v1541, %v1540
  %v1551 = vpack.c.bf16 %v1543, %v1542
  %s1552 = scalar_lea.vmem %s1, 52
  %v1553 = vld [vmem:[%s1552] sm:$0x7]
  %v1555 = vsel %vm67, %v1544, 0
  %v1558 = vsel %vm67, %v1545, 0
  %v1561 = vsel %vm67, %v1546, 0
  %v1564 = vsel %vm67, %v1547, 0
  %v1567 = vsel %vm67, %v1548, 0
  %v1570 = vsel %vm67, %v1549, 0
  %v1573 = vsel %vm67, %v1550, 0
  %v1576 = vsel %vm67, %v1551, 0
  %v1579 = vand.u32 %v1553, %v95
  %1581 = vmatpush.bf16.msra.mxu0 0
  %1582 = vmatpush.bf16.msra.mxu0 0
  %1583 = vmatpush.bf16.msra.mxu0 0
  %1584 = vmatpush.bf16.msra.mxu0 0
  %1585 = vmatpush.bf16.msra.mxu0 0
  %1586 = vmatpush.bf16.msra.mxu0 0
  %1587 = vmatpush.bf16.msra.mxu0 0
  %1588 = vmatpush.bf16.msra.mxu0 %v1579
  %1589 = vmatmul.bf16.gmra.mxu0 %v1555
  %v1590 = vpop.f32.mrf.mxu0
  %v1591 = vadd.f32 0.0, %v1590
  %v1592 = vpop.f32.mrf.mxu0
  %v1593 = vadd.f32 0.0, %v1592
  %1594 = vmatmul.bf16.gmra.mxu0 %v1558
  %v1595 = vpop.f32.mrf.mxu0
  %v1596 = vadd.f32 0.0, %v1595
  %v1597 = vpop.f32.mrf.mxu0
  %v1598 = vadd.f32 0.0, %v1597
  %1599 = vmatmul.bf16.gmra.mxu0 %v1561
  %v1600 = vpop.f32.mrf.mxu0
  %v1601 = vadd.f32 0.0, %v1600
  %v1602 = vpop.f32.mrf.mxu0
  %v1603 = vadd.f32 0.0, %v1602
  %1604 = vmatmul.bf16.gmra.mxu0 %v1564
  %v1605 = vpop.f32.mrf.mxu0
  %v1606 = vadd.f32 0.0, %v1605
  %v1607 = vpop.f32.mrf.mxu0
  %v1608 = vadd.f32 0.0, %v1607
  %1609 = vmatmul.bf16.gmra.mxu0 %v1567
  %v1610 = vpop.f32.mrf.mxu0
  %v1611 = vadd.f32 0.0, %v1610
  %v1612 = vpop.f32.mrf.mxu0
  %v1613 = vadd.f32 0.0, %v1612
  %1614 = vmatmul.bf16.gmra.mxu0 %v1570
  %v1615 = vpop.f32.mrf.mxu0
  %v1616 = vadd.f32 0.0, %v1615
  %v1617 = vpop.f32.mrf.mxu0
  %v1618 = vadd.f32 0.0, %v1617
  %1619 = vmatmul.bf16.gmra.mxu0 %v1573
  %v1620 = vpop.f32.mrf.mxu0
  %v1621 = vadd.f32 0.0, %v1620
  %v1622 = vpop.f32.mrf.mxu0
  %v1623 = vadd.f32 0.0, %v1622
  %1624 = vmatmul.bf16.gmra.mxu0 %v1576
  %v1625 = vpop.f32.mrf.mxu0
  %v1626 = vadd.f32 0.0, %v1625
  %v1627 = vpop.f32.mrf.mxu0
  %v1628 = vadd.f32 0.0, %v1627
  %1629 = vdwg.mxu0
  %v1630 = vadd.f32 %v1511, %v1591
  %v1631 = vadd.f32 %v1512, %v1593
  %v1632 = vadd.f32 %v1513, %v1596
  %v1633 = vadd.f32 %v1514, %v1598
  %v1634 = vadd.f32 %v1515, %v1601
  %v1635 = vadd.f32 %v1516, %v1603
  %v1636 = vadd.f32 %v1517, %v1606
  %v1637 = vadd.f32 %v1518, %v1608
  %v1638 = vadd.f32 %v1519, %v1611
  %v1639 = vadd.f32 %v1520, %v1613
  %v1640 = vadd.f32 %v1521, %v1616
  %v1641 = vadd.f32 %v1522, %v1618
  %v1642 = vadd.f32 %v1523, %v1621
  %v1643 = vadd.f32 %v1524, %v1623
  %v1644 = vadd.f32 %v1525, %v1626
  %v1645 = vadd.f32 %v1526, %v1628
  %v1646 = vld [vmem:[%s1408 + $0x1] sm:$0xff]
  %v1647 = vld [vmem:[%s1408 + $0x11] sm:$0xff]
  %v1648 = vld [vmem:[%s1408 + $0x21] sm:$0xff]
  %v1649 = vld [vmem:[%s1408 + $0x31] sm:$0xff]
  %v1650 = vld [vmem:[%s1408 + $0x41] sm:$0xff]
  %v1651 = vld [vmem:[%s1408 + $0x51] sm:$0xff]
  %v1652 = vld [vmem:[%s1408 + $0x61] sm:$0xff]
  %v1653 = vld [vmem:[%s1408 + $0x71] sm:$0xff]
  %v1654 = vld [vmem:[%s1408 + $0x91] sm:$0xff]
  %v1655 = vld [vmem:[%s1408 + $0xa1] sm:$0xff]
  %v1656 = vld [vmem:[%s1408 + $0xb1] sm:$0xff]
  %v1657 = vld [vmem:[%s1408 + $0xc1] sm:$0xff]
  %v1658 = vld [vmem:[%s1408 + $0xd1] sm:$0xff]
  %v1659 = vld [vmem:[%s1408 + $0xe1] sm:$0xff]
  %v1660 = vld [vmem:[%s1408 + $0xf1] sm:$0xff]
  %v1661 = vld [vmem:[%s1408 + $0x101] sm:$0xff]
  %v1662 = vpack.c.bf16 %v1647, %v1646
  %v1663 = vpack.c.bf16 %v1649, %v1648
  %v1664 = vpack.c.bf16 %v1651, %v1650
  %v1665 = vpack.c.bf16 %v1653, %v1652
  %v1666 = vpack.c.bf16 %v1655, %v1654
  %v1667 = vpack.c.bf16 %v1657, %v1656
  %v1668 = vpack.c.bf16 %v1659, %v1658
  %v1669 = vpack.c.bf16 %v1661, %v1660
  %s1670 = scalar_lea.vmem %s1, 56
  %v1671 = vld [vmem:[%s1670] sm:$0x7]
  %v1673 = vsel %vm67, %v1662, 0
  %v1676 = vsel %vm67, %v1663, 0
  %v1679 = vsel %vm67, %v1664, 0
  %v1682 = vsel %vm67, %v1665, 0
  %v1685 = vsel %vm67, %v1666, 0
  %v1688 = vsel %vm67, %v1667, 0
  %v1691 = vsel %vm67, %v1668, 0
  %v1694 = vsel %vm67, %v1669, 0
  %v1697 = vand.u32 %v1671, %v95
  %1699 = vmatpush.bf16.msra.mxu0 0
  %1700 = vmatpush.bf16.msra.mxu0 0
  %1701 = vmatpush.bf16.msra.mxu0 0
  %1702 = vmatpush.bf16.msra.mxu0 0
  %1703 = vmatpush.bf16.msra.mxu0 0
  %1704 = vmatpush.bf16.msra.mxu0 0
  %1705 = vmatpush.bf16.msra.mxu0 0
  %1706 = vmatpush.bf16.msra.mxu0 %v1697
  %1707 = vmatmul.bf16.gmra.mxu0 %v1673
  %v1708 = vpop.f32.mrf.mxu0
  %v1709 = vadd.f32 0.0, %v1708
  %v1710 = vpop.f32.mrf.mxu0
  %v1711 = vadd.f32 0.0, %v1710
  %1712 = vmatmul.bf16.gmra.mxu0 %v1676
  %v1713 = vpop.f32.mrf.mxu0
  %v1714 = vadd.f32 0.0, %v1713
  %v1715 = vpop.f32.mrf.mxu0
  %v1716 = vadd.f32 0.0, %v1715
  %1717 = vmatmul.bf16.gmra.mxu0 %v1679
  %v1718 = vpop.f32.mrf.mxu0
  %v1719 = vadd.f32 0.0, %v1718
  %v1720 = vpop.f32.mrf.mxu0
  %v1721 = vadd.f32 0.0, %v1720
  %1722 = vmatmul.bf16.gmra.mxu0 %v1682
  %v1723 = vpop.f32.mrf.mxu0
  %v1724 = vadd.f32 0.0, %v1723
  %v1725 = vpop.f32.mrf.mxu0
  %v1726 = vadd.f32 0.0, %v1725
  %1727 = vmatmul.bf16.gmra.mxu0 %v1685
  %v1728 = vpop.f32.mrf.mxu0
  %v1729 = vadd.f32 0.0, %v1728
  %v1730 = vpop.f32.mrf.mxu0
  %v1731 = vadd.f32 0.0, %v1730
  %1732 = vmatmul.bf16.gmra.mxu0 %v1688
  %v1733 = vpop.f32.mrf.mxu0
  %v1734 = vadd.f32 0.0, %v1733
  %v1735 = vpop.f32.mrf.mxu0
  %v1736 = vadd.f32 0.0, %v1735
  %1737 = vmatmul.bf16.gmra.mxu0 %v1691
  %v1738 = vpop.f32.mrf.mxu0
  %v1739 = vadd.f32 0.0, %v1738
  %v1740 = vpop.f32.mrf.mxu0
  %v1741 = vadd.f32 0.0, %v1740
  %1742 = vmatmul.bf16.gmra.mxu0 %v1694
  %v1743 = vpop.f32.mrf.mxu0
  %v1744 = vadd.f32 0.0, %v1743
  %v1745 = vpop.f32.mrf.mxu0
  %v1746 = vadd.f32 0.0, %v1745
  %1747 = vdwg.mxu0
  %v1748 = vadd.f32 %v1630, %v1709
  %v1749 = vadd.f32 %v1631, %v1711
  %v1750 = vadd.f32 %v1632, %v1714
  %v1751 = vadd.f32 %v1633, %v1716
  %v1752 = vadd.f32 %v1634, %v1719
  %v1753 = vadd.f32 %v1635, %v1721
  %v1754 = vadd.f32 %v1636, %v1724
  %v1755 = vadd.f32 %v1637, %v1726
  %v1756 = vadd.f32 %v1638, %v1729
  %v1757 = vadd.f32 %v1639, %v1731
  %v1758 = vadd.f32 %v1640, %v1734
  %v1759 = vadd.f32 %v1641, %v1736
  %v1760 = vadd.f32 %v1642, %v1739
  %v1761 = vadd.f32 %v1643, %v1741
  %v1762 = vadd.f32 %v1644, %v1744
  %v1763 = vadd.f32 %v1645, %v1746
  %v1764 = vld [vmem:[%s1527 + $0x1] sm:$0xff]
  %v1765 = vld [vmem:[%s1527 + $0x11] sm:$0xff]
  %v1766 = vld [vmem:[%s1527 + $0x21] sm:$0xff]
  %v1767 = vld [vmem:[%s1527 + $0x31] sm:$0xff]
  %v1768 = vld [vmem:[%s1527 + $0x41] sm:$0xff]
  %v1769 = vld [vmem:[%s1527 + $0x51] sm:$0xff]
  %v1770 = vld [vmem:[%s1527 + $0x61] sm:$0xff]
  %v1771 = vld [vmem:[%s1527 + $0x71] sm:$0xff]
  %v1772 = vld [vmem:[%s1527 + $0x91] sm:$0xff]
  %v1773 = vld [vmem:[%s1527 + $0xa1] sm:$0xff]
  %v1774 = vld [vmem:[%s1527 + $0xb1] sm:$0xff]
  %v1775 = vld [vmem:[%s1527 + $0xc1] sm:$0xff]
  %v1776 = vld [vmem:[%s1527 + $0xd1] sm:$0xff]
  %v1777 = vld [vmem:[%s1527 + $0xe1] sm:$0xff]
  %v1778 = vld [vmem:[%s1527 + $0xf1] sm:$0xff]
  %v1779 = vld [vmem:[%s1527 + $0x101] sm:$0xff]
  %v1780 = vpack.c.bf16 %v1765, %v1764
  %v1781 = vpack.c.bf16 %v1767, %v1766
  %v1782 = vpack.c.bf16 %v1769, %v1768
  %v1783 = vpack.c.bf16 %v1771, %v1770
  %v1784 = vpack.c.bf16 %v1773, %v1772
  %v1785 = vpack.c.bf16 %v1775, %v1774
  %v1786 = vpack.c.bf16 %v1777, %v1776
  %v1787 = vpack.c.bf16 %v1779, %v1778
  %s1788 = scalar_lea.vmem %s1, 60
  %v1789 = vld [vmem:[%s1788] sm:$0x7]
  %v1791 = vsel %vm67, %v1780, 0
  %v1794 = vsel %vm67, %v1781, 0
  %v1797 = vsel %vm67, %v1782, 0
  %v1800 = vsel %vm67, %v1783, 0
  %v1803 = vsel %vm67, %v1784, 0
  %v1806 = vsel %vm67, %v1785, 0
  %v1809 = vsel %vm67, %v1786, 0
  %v1812 = vsel %vm67, %v1787, 0
  %v1815 = vand.u32 %v1789, %v95
  %1817 = vmatpush.bf16.msra.mxu0 0
  %1818 = vmatpush.bf16.msra.mxu0 0
  %1819 = vmatpush.bf16.msra.mxu0 0
  %1820 = vmatpush.bf16.msra.mxu0 0
  %1821 = vmatpush.bf16.msra.mxu0 0
  %1822 = vmatpush.bf16.msra.mxu0 0
  %1823 = vmatpush.bf16.msra.mxu0 0
  %1824 = vmatpush.bf16.msra.mxu0 %v1815
  %1825 = vmatmul.bf16.gmra.mxu0 %v1791
  %v1826 = vpop.f32.mrf.mxu0
  %v1827 = vadd.f32 0.0, %v1826
  %v1828 = vpop.f32.mrf.mxu0
  %v1829 = vadd.f32 0.0, %v1828
  %1830 = vmatmul.bf16.gmra.mxu0 %v1794
  %v1831 = vpop.f32.mrf.mxu0
  %v1832 = vadd.f32 0.0, %v1831
  %v1833 = vpop.f32.mrf.mxu0
  %v1834 = vadd.f32 0.0, %v1833
  %1835 = vmatmul.bf16.gmra.mxu0 %v1797
  %v1836 = vpop.f32.mrf.mxu0
  %v1837 = vadd.f32 0.0, %v1836
  %v1838 = vpop.f32.mrf.mxu0
  %v1839 = vadd.f32 0.0, %v1838
  %1840 = vmatmul.bf16.gmra.mxu0 %v1800
  %v1841 = vpop.f32.mrf.mxu0
  %v1842 = vadd.f32 0.0, %v1841
  %v1843 = vpop.f32.mrf.mxu0
  %v1844 = vadd.f32 0.0, %v1843
  %1845 = vmatmul.bf16.gmra.mxu0 %v1803
  %v1846 = vpop.f32.mrf.mxu0
  %v1847 = vadd.f32 0.0, %v1846
  %v1848 = vpop.f32.mrf.mxu0
  %v1849 = vadd.f32 0.0, %v1848
  %1850 = vmatmul.bf16.gmra.mxu0 %v1806
  %v1851 = vpop.f32.mrf.mxu0
  %v1852 = vadd.f32 0.0, %v1851
  %v1853 = vpop.f32.mrf.mxu0
  %v1854 = vadd.f32 0.0, %v1853
  %1855 = vmatmul.bf16.gmra.mxu0 %v1809
  %v1856 = vpop.f32.mrf.mxu0
  %v1857 = vadd.f32 0.0, %v1856
  %v1858 = vpop.f32.mrf.mxu0
  %v1859 = vadd.f32 0.0, %v1858
  %1860 = vmatmul.bf16.gmra.mxu0 %v1812
  %v1861 = vpop.f32.mrf.mxu0
  %v1862 = vadd.f32 0.0, %v1861
  %v1863 = vpop.f32.mrf.mxu0
  %v1864 = vadd.f32 0.0, %v1863
  %1865 = vdwg.mxu0
  %v1866 = vadd.f32 %v1748, %v1827
  %v1867 = vadd.f32 %v1749, %v1829
  %v1868 = vadd.f32 %v1750, %v1832
  %v1869 = vadd.f32 %v1751, %v1834
  %v1870 = vadd.f32 %v1752, %v1837
  %v1871 = vadd.f32 %v1753, %v1839
  %v1872 = vadd.f32 %v1754, %v1842
  %v1873 = vadd.f32 %v1755, %v1844
  %v1874 = vadd.f32 %v1756, %v1847
  %v1875 = vadd.f32 %v1757, %v1849
  %v1876 = vadd.f32 %v1758, %v1852
  %v1877 = vadd.f32 %v1759, %v1854
  %v1878 = vadd.f32 %v1760, %v1857
  %v1879 = vadd.f32 %v1761, %v1859
  %v1880 = vadd.f32 %v1762, %v1862
  %v1881 = vadd.f32 %v1763, %v1864
  %v1882 = vld [vmem:[%s2] sm:$0x1]
  %v1884 = vperm.slane %v1882, 0
  %v1886 = vadd.f32 %v1866, %v1884
  %v1887 = vadd.f32 %v1867, %v1884
  %v1888 = vadd.f32 %v1868, %v1884
  %v1889 = vadd.f32 %v1869, %v1884
  %v1890 = vadd.f32 %v1870, %v1884
  %v1891 = vadd.f32 %v1871, %v1884
  %v1892 = vadd.f32 %v1872, %v1884
  %v1893 = vadd.f32 %v1873, %v1884
  %v1894 = vadd.f32 %v1874, %v1884
  %v1895 = vadd.f32 %v1875, %v1884
  %v1896 = vadd.f32 %v1876, %v1884
  %v1897 = vadd.f32 %v1877, %v1884
  %v1898 = vadd.f32 %v1878, %v1884
  %v1899 = vadd.f32 %v1879, %v1884
  %v1900 = vadd.f32 %v1880, %v1884
  %v1901 = vadd.f32 %v1881, %v1884
  %vm1902 = vcmp.gt.f32.partialorder %v1886, 0.0
  %vm1903 = vcmp.gt.f32.partialorder %v1887, 0.0
  %vm1904 = vcmp.gt.f32.partialorder %v1888, 0.0
  %vm1905 = vcmp.gt.f32.partialorder %v1889, 0.0
  %vm1906 = vcmp.gt.f32.partialorder %v1890, 0.0
  %vm1907 = vcmp.gt.f32.partialorder %v1891, 0.0
  %vm1908 = vcmp.gt.f32.partialorder %v1892, 0.0
  %vm1909 = vcmp.gt.f32.partialorder %v1893, 0.0
  %vm1910 = vcmp.gt.f32.partialorder %v1894, 0.0
  %vm1911 = vcmp.gt.f32.partialorder %v1895, 0.0
  %vm1912 = vcmp.gt.f32.partialorder %v1896, 0.0
  %vm1913 = vcmp.gt.f32.partialorder %v1897, 0.0
  %vm1914 = vcmp.gt.f32.partialorder %v1898, 0.0
  %vm1915 = vcmp.gt.f32.partialorder %v1899, 0.0
  %vm1916 = vcmp.gt.f32.partialorder %v1900, 0.0
  %vm1917 = vcmp.gt.f32.partialorder %v1901, 0.0
  %v1918 = vmul.f32 %v1886, 0.2
  %v1919 = vmul.f32 %v1887, 0.2
  %v1920 = vmul.f32 %v1888, 0.2
  %v1921 = vmul.f32 %v1889, 0.2
  %v1922 = vmul.f32 %v1890, 0.2
  %v1923 = vmul.f32 %v1891, 0.2
  %v1924 = vmul.f32 %v1892, 0.2
  %v1925 = vmul.f32 %v1893, 0.2
  %v1926 = vmul.f32 %v1894, 0.2
  %v1927 = vmul.f32 %v1895, 0.2
  %v1928 = vmul.f32 %v1896, 0.2
  %v1929 = vmul.f32 %v1897, 0.2
  %v1930 = vmul.f32 %v1898, 0.2
  %v1931 = vmul.f32 %v1899, 0.2
  %v1932 = vmul.f32 %v1900, 0.2
  %v1933 = vmul.f32 %v1901, 0.2
  %v1934 = vsel %vm1902, %v1886, %v1918
  %v1935 = vsel %vm1903, %v1887, %v1919
  %v1936 = vsel %vm1904, %v1888, %v1920
  %v1937 = vsel %vm1905, %v1889, %v1921
  %v1938 = vsel %vm1906, %v1890, %v1922
  %v1939 = vsel %vm1907, %v1891, %v1923
  %v1940 = vsel %vm1908, %v1892, %v1924
  %v1941 = vsel %vm1909, %v1893, %v1925
  %v1942 = vsel %vm1910, %v1894, %v1926
  %v1943 = vsel %vm1911, %v1895, %v1927
  %v1944 = vsel %vm1912, %v1896, %v1928
  %v1945 = vsel %vm1913, %v1897, %v1929
  %v1946 = vsel %vm1914, %v1898, %v1930
  %v1947 = vsel %vm1915, %v1899, %v1931
  %v1948 = vsel %vm1916, %v1900, %v1932
  %v1949 = vsel %vm1917, %v1901, %v1933
  %v1950 = vpack.c.bf16 %v1934, %v1934
  %v1951 = vpack.c.bf16 %v1935, %v1935
  %v1952 = vpack.c.bf16 %v1936, %v1936
  %v1953 = vpack.c.bf16 %v1937, %v1937
  %v1954 = vpack.c.bf16 %v1938, %v1938
  %v1955 = vpack.c.bf16 %v1939, %v1939
  %v1956 = vpack.c.bf16 %v1940, %v1940
  %v1957 = vpack.c.bf16 %v1941, %v1941
  %v1958 = vpack.c.bf16 %v1942, %v1942
  %v1959 = vpack.c.bf16 %v1943, %v1943
  %v1960 = vpack.c.bf16 %v1944, %v1944
  %v1961 = vpack.c.bf16 %v1945, %v1945
  %v1962 = vpack.c.bf16 %v1946, %v1946
  %v1963 = vpack.c.bf16 %v1947, %v1947
  %v1964 = vpack.c.bf16 %v1948, %v1948
  %v1965 = vpack.c.bf16 %v1949, %v1949
  %vm1966 = vcmask 125952
  %1967 = vst.msk [vmem:[%s3] sm:$0xf] %vm1966, %v1950
  %1968 = vst.msk [vmem:[%s3 + $0x4] sm:$0xf] %vm1966, %v1951
  %1969 = vst.msk [vmem:[%s3 + $0x8] sm:$0xf] %vm1966, %v1952
  %1970 = vst.msk [vmem:[%s3 + $0xc] sm:$0xf] %vm1966, %v1953
  %1971 = vst.msk [vmem:[%s3 + $0x10] sm:$0xf] %vm1966, %v1954
  %1972 = vst.msk [vmem:[%s3 + $0x14] sm:$0xf] %vm1966, %v1955
  %1973 = vst.msk [vmem:[%s3 + $0x18] sm:$0xf] %vm1966, %v1956
  %1974 = vst.msk [vmem:[%s3 + $0x1c] sm:$0xf] %vm1966, %v1957
  %1975 = vst.msk [vmem:[%s3 + $0x20] sm:$0xf] %vm1966, %v1958
  %1976 = vst.msk [vmem:[%s3 + $0x24] sm:$0xf] %vm1966, %v1959
  %1977 = vst.msk [vmem:[%s3 + $0x28] sm:$0xf] %vm1966, %v1960
  %1978 = vst.msk [vmem:[%s3 + $0x2c] sm:$0xf] %vm1966, %v1961
  %1979 = vst.msk [vmem:[%s3 + $0x30] sm:$0xf] %vm1966, %v1962
  %1980 = vst.msk [vmem:[%s3 + $0x34] sm:$0xf] %vm1966, %v1963
  %1981 = vst.msk [vmem:[%s3 + $0x38] sm:$0xf] %vm1966, %v1964
  %1982 = vst.msk [vmem:[%s3 + $0x3c] sm:$0xf] %vm1966, %v1965
  // Predicated region
  $region14: #{digit_image_discriminator_forward.2} parent=0 // pred_check
    _
  $region15: #{digit_image_discriminator_forward.2} parent=0 // pred_check_branch
    %1984 = sbr.rel (0) target = $region17
  $region16: #{digit_image_discriminator_forward.2} parent=0 // pred_region
    _
  $region17: #{digit_image_discriminator_forward.2} parent=0 // pred_fallthru
    _
  // Predicated region
  $region18: #{digit_image_discriminator_forward.2} parent=0 // pred_check
    _
  $region19: #{digit_image_discriminator_forward.2} parent=0 // pred_check_branch
    %1986 = sbr.rel (0) target = $region21
  $region20: #{digit_image_discriminator_forward.2} parent=0 // pred_region
    _
  $region21: #{digit_image_discriminator_forward.2} parent=0 // pred_fallthru
    _

// kernel: digit_image_discriminator_forward.3
$region0: #{digit_image_discriminator_forward.3}
  #allocation0 [shape = 'u32[]', space=smem, size = 0x4, offset = 0x4, fixed_abs, tag = 'smem constant byte address 0x4 - core index']
  #allocation1 [shape = 'u32[72,128]{1,0:T(1,128)}', space=vmem, size = 0x9000, scoped, tag = 'internal scratch']
  #allocation2 [shape = 'f32[1,1]{1,0:T(1,128)S(1)}', space=vmem, size = 0x200, scoped, tag = 'scoped memory for digit_image_discriminator_forward.3']
  %s0 = inlined_call_operand.vmem [shape: bf16[32,256], index: 0, kind: input, shape index: {}]
  %s1 = inlined_call_operand.vmem [shape: bf16[256,32], index: 1, kind: input, shape index: {}]
  %s2 = inlined_call_operand.vmem [shape: f32[1,32], index: 2, kind: input, shape index: {}]
  %s3 = inlined_call_operand.vmem [shape: f32[1,32], index: 3, kind: input, shape index: {}]
  %s4 = inlined_call_operand.vmem [shape: f32[1,16,32], index: 4, kind: input, shape index: {}]
  %s5 = inlined_call_operand.<no memory space> [shape: f32[1,1], index: 5, kind: input, shape index: {}]
  %s6 = inlined_call_operand.vmem [shape: f32[2,1], index: 6, kind: output, shape index: {}]
  %s7 = sld [smem:[#allocation0]]
  $region34: #{digit_image_discriminator_forward.3} parent=0
    _
  %s9 = ssub.s32 1, %s7
  %s10 = scalar_select 0, %s9, %s7
  %v11 = vstv %s5
  %12 = vst [vmem:[#allocation2] sm:$0x1] %v11
  // Predicated region
  $region2: #{digit_image_discriminator_forward.3} parent=0 // pred_check
    _
  $region3: #{digit_image_discriminator_forward.3} parent=0 // pred_check_branch
    %14 = sbr.rel (0) target = $region5
  $region4: #{digit_image_discriminator_forward.3} parent=0 // pred_region
    _
  $region5: #{digit_image_discriminator_forward.3} parent=0 // pred_fallthru
    _
  // Predicated region
  $region6: #{digit_image_discriminator_forward.3} parent=0 // pred_check
    _
  $region7: #{digit_image_discriminator_forward.3} parent=0 // pred_check_branch
    %16 = sbr.rel (0) target = $region9
  $region8: #{digit_image_discriminator_forward.3} parent=0 // pred_region
    _
  $region9: #{digit_image_discriminator_forward.3} parent=0 // pred_fallthru
    _
  // Predicated region
  $region10: #{digit_image_discriminator_forward.3} parent=0 // pred_check
    _
  $region11: #{digit_image_discriminator_forward.3} parent=0 // pred_check_branch
    %18 = sbr.rel (0) target = $region13
  $region12: #{digit_image_discriminator_forward.3} parent=0 // pred_region
    _
  $region13: #{digit_image_discriminator_forward.3} parent=0 // pred_fallthru
    _
  // Predicated region
  $region14: #{digit_image_discriminator_forward.3} parent=0 // pred_check
    _
  $region15: #{digit_image_discriminator_forward.3} parent=0 // pred_check_branch
    %20 = sbr.rel (0) target = $region17
  $region16: #{digit_image_discriminator_forward.3} parent=0 // pred_region
    _
  $region17: #{digit_image_discriminator_forward.3} parent=0 // pred_fallthru
    _
  // Predicated region
  $region18: #{digit_image_discriminator_forward.3} parent=0 // pred_check
    _
  $region19: #{digit_image_discriminator_forward.3} parent=0 // pred_check_branch
    %22 = sbr.rel (0) target = $region21
  $region20: #{digit_image_discriminator_forward.3} parent=0 // pred_region
    _
  $region21: #{digit_image_discriminator_forward.3} parent=0 // pred_fallthru
    _
  // Predicated region
  $region22: #{digit_image_discriminator_forward.3} parent=0 // pred_check
    _
  $region23: #{digit_image_discriminator_forward.3} parent=0 // pred_check_branch
    %24 = sbr.rel (0) target = $region25
  $region24: #{digit_image_discriminator_forward.3} parent=0 // pred_region
    _
  $region25: #{digit_image_discriminator_forward.3} parent=0 // pred_fallthru
    _
  %v25 = vld [vmem:[%s0] sm:$0xff]
  %v26 = vld [vmem:[%s0 + $0x8] sm:$0xff]
  %v27 = vld [vmem:[%s0 + $0x10] sm:$0xff]
  %v28 = vld [vmem:[%s0 + $0x18] sm:$0xff]
  %v29 = vld [vmem:[%s1] sm:$0xf]
  %v30 = vld [vmem:[%s1 + $0x4] sm:$0xf]
  %v31 = vld [vmem:[%s1 + $0x8] sm:$0xf]
  %v32 = vld [vmem:[%s1 + $0xc] sm:$0xf]
  %v33 = vld [vmem:[%s1 + $0x10] sm:$0xf]
  %v34 = vld [vmem:[%s1 + $0x14] sm:$0xf]
  %v35 = vld [vmem:[%s1 + $0x18] sm:$0xf]
  %v36 = vld [vmem:[%s1 + $0x1c] sm:$0xf]
  %v37 = vld [vmem:[%s1 + $0x20] sm:$0xf]
  %v38 = vld [vmem:[%s1 + $0x24] sm:$0xf]
  %v39 = vld [vmem:[%s1 + $0x28] sm:$0xf]
  %v40 = vld [vmem:[%s1 + $0x2c] sm:$0xf]
  %v41 = vld [vmem:[%s1 + $0x30] sm:$0xf]
  %v42 = vld [vmem:[%s1 + $0x34] sm:$0xf]
  %v43 = vld [vmem:[%s1 + $0x38] sm:$0xf]
  %v44 = vld [vmem:[%s1 + $0x3c] sm:$0xf]
  %v45 = vld [vmem:[%s1 + $0x40] sm:$0xf]
  %v46 = vld [vmem:[%s1 + $0x44] sm:$0xf]
  %v47 = vld [vmem:[%s1 + $0x48] sm:$0xf]
  %v48 = vld [vmem:[%s1 + $0x4c] sm:$0xf]
  %v49 = vld [vmem:[%s1 + $0x50] sm:$0xf]
  %v50 = vld [vmem:[%s1 + $0x54] sm:$0xf]
  %v51 = vld [vmem:[%s1 + $0x58] sm:$0xf]
  %v52 = vld [vmem:[%s1 + $0x5c] sm:$0xf]
  %v53 = vld [vmem:[%s1 + $0x60] sm:$0xf]
  %v54 = vld [vmem:[%s1 + $0x64] sm:$0xf]
  %v55 = vld [vmem:[%s1 + $0x68] sm:$0xf]
  %v56 = vld [vmem:[%s1 + $0x6c] sm:$0xf]
  %v57 = vld [vmem:[%s1 + $0x70] sm:$0xf]
  %v58 = vld [vmem:[%s1 + $0x74] sm:$0xf]
  %v59 = vld [vmem:[%s1 + $0x78] sm:$0xf]
  %v60 = vld [vmem:[%s1 + $0x7c] sm:$0xf]
  %v65 = vunpack.c.l.b16 %v25
  %v66 = vunpack.c.h.b16 %v25
  %v67 = vunpack.c.l.b16 %v26
  %v68 = vunpack.c.h.b16 %v26
  %v69 = vunpack.c.l.b16 %v27
  %v70 = vunpack.c.h.b16 %v27
  %v71 = vunpack.c.l.b16 %v28
  %v72 = vunpack.c.h.b16 %v28
  %v73 = vpack.c.b16 %v67, %v65
  %v74 = vpack.c.b16 %v68, %v66
  %v75 = vpack.c.b16 %v71, %v69
  %v76 = vpack.c.b16 %v72, %v70
  %v113 = vunpack.c.l.b16 %v29
  %v114 = vunpack.c.l.b16 %v30
  %v115 = vunpack.c.l.b16 %v31
  %v116 = vunpack.c.l.b16 %v32
  %v117 = vunpack.c.l.b16 %v33
  %v118 = vunpack.c.l.b16 %v34
  %v119 = vunpack.c.l.b16 %v35
  %v120 = vunpack.c.l.b16 %v36
  %v121 = vunpack.c.l.b16 %v37
  %v122 = vunpack.c.l.b16 %v38
  %v123 = vunpack.c.l.b16 %v39
  %v124 = vunpack.c.l.b16 %v40
  %v125 = vunpack.c.l.b16 %v41
  %v126 = vunpack.c.l.b16 %v42
  %v127 = vunpack.c.l.b16 %v43
  %v128 = vunpack.c.l.b16 %v44
  %v129 = vunpack.c.l.b16 %v45
  %v130 = vunpack.c.l.b16 %v46
  %v131 = vunpack.c.l.b16 %v47
  %v132 = vunpack.c.l.b16 %v48
  %v133 = vunpack.c.l.b16 %v49
  %v134 = vunpack.c.l.b16 %v50
  %v135 = vunpack.c.l.b16 %v51
  %v136 = vunpack.c.l.b16 %v52
  %v137 = vunpack.c.l.b16 %v53
  %v138 = vunpack.c.l.b16 %v54
  %v139 = vunpack.c.l.b16 %v55
  %v140 = vunpack.c.l.b16 %v56
  %v141 = vunpack.c.l.b16 %v57
  %v142 = vunpack.c.l.b16 %v58
  %v143 = vunpack.c.l.b16 %v59
  %v144 = vunpack.c.l.b16 %v60
  %v145 = vpack.c.b16 %v114, %v113
  %v146 = vpack.c.b16 %v116, %v115
  %v147 = vpack.c.b16 %v118, %v117
  %v148 = vpack.c.b16 %v120, %v119
  %v149 = vpack.c.b16 %v122, %v121
  %v150 = vpack.c.b16 %v124, %v123
  %v151 = vpack.c.b16 %v126, %v125
  %v152 = vpack.c.b16 %v128, %v127
  %v153 = vpack.c.b16 %v130, %v129
  %v154 = vpack.c.b16 %v132, %v131
  %v155 = vpack.c.b16 %v134, %v133
  %v156 = vpack.c.b16 %v136, %v135
  %v157 = vpack.c.b16 %v138, %v137
  %v158 = vpack.c.b16 %v140, %v139
  %v159 = vpack.c.b16 %v142, %v141
  %v160 = vpack.c.b16 %v144, %v143
  %177 = vmatpush.bf16.msra.mxu0 %v152
  %178 = vmatpush.bf16.msra.mxu0 %v151
  %179 = vmatpush.bf16.msra.mxu0 %v150
  %180 = vmatpush.bf16.msra.mxu0 %v149
  %181 = vmatpush.bf16.msra.mxu0 %v148
  %182 = vmatpush.bf16.msra.mxu0 %v147
  %183 = vmatpush.bf16.msra.mxu0 %v146
  %184 = vmatpush.bf16.msra.mxu0 %v145
  %185 = vmatmul.bf16.gmra.mxu0 %v73
  %v186 = vpop.f32.mrf.mxu0
  %v187 = vadd.f32 0.0, %v186
  %v188 = vpop.f32.mrf.mxu0
  %v189 = vadd.f32 0.0, %v188
  %190 = vmatmul.bf16.gmra.mxu0 %v75
  %v191 = vpop.f32.mrf.mxu0
  %v192 = vadd.f32 0.0, %v191
  %v193 = vpop.f32.mrf.mxu0
  %v194 = vadd.f32 0.0, %v193
  %195 = vdwg.mxu0
  %196 = vmatpush.bf16.msra.mxu0 %v160
  %197 = vmatpush.bf16.msra.mxu0 %v159
  %198 = vmatpush.bf16.msra.mxu0 %v158
  %199 = vmatpush.bf16.msra.mxu0 %v157
  %200 = vmatpush.bf16.msra.mxu0 %v156
  %201 = vmatpush.bf16.msra.mxu0 %v155
  %202 = vmatpush.bf16.msra.mxu0 %v154
  %203 = vmatpush.bf16.msra.mxu0 %v153
  %204 = vmatmul.bf16.gmra.mxu0 %v74
  %v205 = vpop.f32.mrf.mxu0
  %v206 = vadd.f32 %v187, %v205
  %v207 = vpop.f32.mrf.mxu0
  %v208 = vadd.f32 %v189, %v207
  %209 = vmatmul.bf16.gmra.mxu0 %v76
  %v210 = vpop.f32.mrf.mxu0
  %v211 = vadd.f32 %v192, %v210
  %v212 = vpop.f32.mrf.mxu0
  %v213 = vadd.f32 %v194, %v212
  %214 = vdwg.mxu0
  %vm215 = vcmask 261120
  %v216 = vsel %vm215, %v206, 0.0
  %v217 = vsel %vm215, %v208, 0.0
  %v218 = vadd.f32 %v216, %v217
  %v219 = vrot.slane %v218, 4
  %v220 = vadd.f32 %v218, %v219
  %v221 = vrot.slane %v220, 2
  %v222 = vadd.f32 %v220, %v221
  %v223 = vrot.slane %v222, 1
  %v224 = vadd.f32 %v222, %v223
  %v225 = vsel %vm215, %v211, 0.0
  %v226 = vsel %vm215, %v213, 0.0
  %v227 = vadd.f32 %v225, %v226
  %v228 = vrot.slane %v227, 4
  %v229 = vadd.f32 %v227, %v228
  %v230 = vrot.slane %v229, 2
  %v231 = vadd.f32 %v229, %v230
  %v232 = vrot.slane %v231, 1
  %v233 = vadd.f32 %v231, %v232
  %v234 = vrcp.pop 16.0
  %v235 = vmul.f32 16.0, %v234
  %v236 = vsub.f32 1.0, %v235
  %v237 = vmul.f32 %v234, %v236
  %v238 = vadd.f32 %v234, %v237
  %vm239 = vweird.f32 %v234
  %v240 = vsel %vm239, %v234, %v238
  %v241 = vmul.f32 %v224, %v240
  %v242 = vmul.f32 %v233, %v240
  %v243 = vsub.f32 %v206, %v241
  %v244 = vsub.f32 %v208, %v241
  %v245 = vsub.f32 %v211, %v242
  %v246 = vsub.f32 %v213, %v242
  %v247 = vmul.f32 %v243, %v243
  %v248 = vmul.f32 %v244, %v244
  %v249 = vmul.f32 %v245, %v245
  %v250 = vmul.f32 %v246, %v246
  %v251 = vsel %vm215, %v247, 0.0
  %v252 = vsel %vm215, %v248, 0.0
  %v253 = vadd.f32 %v251, %v252
  %v254 = vrot.slane %v253, 4
  %v255 = vadd.f32 %v253, %v254
  %v256 = vrot.slane %v255, 2
  %v257 = vadd.f32 %v255, %v256
  %v258 = vrot.slane %v257, 1
  %v259 = vadd.f32 %v257, %v258
  %v260 = vsel %vm215, %v249, 0.0
  %v261 = vsel %vm215, %v250, 0.0
  %v262 = vadd.f32 %v260, %v261
  %v263 = vrot.slane %v262, 4
  %v264 = vadd.f32 %v262, %v263
  %v265 = vrot.slane %v264, 2
  %v266 = vadd.f32 %v264, %v265
  %v267 = vrot.slane %v266, 1
  %v268 = vadd.f32 %v266, %v267
  %v269 = vmul.f32 %v259, %v240
  %v270 = vmul.f32 %v268, %v240
  %v271 = vadd.f32 %v269, 1e-05
  %v272 = vadd.f32 %v270, 1e-05
  %v273 = vrsqrt.pop %v271
  %v274 = vmul.f32 %v273, %v271
  %v275 = vmul.f32 %v274, %v273
  %v276 = vmul.f32 0.5, %v275
  %v277 = vsub.f32 1.5, %v276
  %v278 = vmul.f32 %v273, %v277
  %vm279 = vweird.f32 %v271
  %vm280 = vweird.f32 %v273
  %vm281 = vmor %vm279, %vm280
  %v282 = vsel %vm281, %v273, %v278
  %v283 = vrsqrt.pop %v272
  %v284 = vmul.f32 %v283, %v272
  %v285 = vmul.f32 %v284, %v283
  %v286 = vmul.f32 0.5, %v285
  %v287 = vsub.f32 1.5, %v286
  %v288 = vmul.f32 %v283, %v287
  %vm289 = vweird.f32 %v272
  %vm290 = vweird.f32 %v283
  %vm291 = vmor %vm289, %vm290
  %v292 = vsel %vm291, %v283, %v288
  %v293 = vmul.f32 %v243, %v282
  %v294 = vmul.f32 %v244, %v282
  %v295 = vmul.f32 %v245, %v292
  %v296 = vmul.f32 %v246, %v292
  %v297 = vld [vmem:[%s2] sm:$0x1]
  %v299 = vperm.slane %v297, 0
  %v301 = vmul.f32 %v293, %v299
  %v302 = vmul.f32 %v294, %v299
  %v303 = vmul.f32 %v295, %v299
  %v304 = vmul.f32 %v296, %v299
  %v305 = vld [vmem:[%s3] sm:$0x1]
  %v307 = vperm.slane %v305, 0
  %v309 = vadd.f32 %v301, %v307
  %v310 = vadd.f32 %v302, %v307
  %v311 = vadd.f32 %v303, %v307
  %v312 = vadd.f32 %v304, %v307
  %vm313 = vcmp.gt.f32.partialorder %v309, 0.0
  %vm314 = vcmp.gt.f32.partialorder %v310, 0.0
  %vm315 = vcmp.gt.f32.partialorder %v311, 0.0
  %vm316 = vcmp.gt.f32.partialorder %v312, 0.0
  %v317 = vmul.f32 %v309, 0.2
  %v318 = vmul.f32 %v310, 0.2
  %v319 = vmul.f32 %v311, 0.2
  %v320 = vmul.f32 %v312, 0.2
  %v321 = vsel %vm313, %v309, %v317
  %v322 = vsel %vm314, %v310, %v318
  %v323 = vsel %vm315, %v311, %v319
  %v324 = vsel %vm316, %v312, %v320
  %v325 = vld [vmem:[%s4] sm:$0xff]
  %v326 = vld [vmem:[%s4 + $0x8] sm:$0xff]
  %v327 = vmul.f32 %v321, %v325
  %v328 = vmul.f32 %v322, %v326
  %v329 = vmul.f32 %v323, %v325
  %v330 = vmul.f32 %v324, %v326
  %v331 = vsel %vm215, %v327, 0.0
  %332 = vadd.xlane.f32.xlu0 %v331
  %v333 = vpop.xlane.xlu0 %332
  %v334 = vsel %vm215, %v328, 0.0
  %335 = vadd.xlane.f32.xlu0 %v334
  %v336 = vpop.xlane.xlu0 %335
  %v337 = vsel %vm215, %v329, 0.0
  %338 = vadd.xlane.f32.xlu0 %v337
  %v339 = vpop.xlane.xlu0 %338
  %v340 = vsel %vm215, %v330, 0.0
  %341 = vadd.xlane.f32.xlu0 %v340
  %v342 = vpop.xlane.xlu0 %341
  %v343 = vadd.f32 %v333, %v336
  %v344 = vrot.slane %v343, 4
  %v345 = vadd.f32 %v343, %v344
  %v346 = vrot.slane %v345, 2
  %v347 = vadd.f32 %v345, %v346
  %v348 = vrot.slane %v347, 1
  %v349 = vadd.f32 %v347, %v348
  %v350 = vadd.f32 %v339, %v342
  %v351 = vrot.slane %v350, 4
  %v352 = vadd.f32 %v350, %v351
  %v353 = vrot.slane %v352, 2
  %v354 = vadd.f32 %v352, %v353
  %v355 = vrot.slane %v354, 1
  %v356 = vadd.f32 %v354, %v355
  %v357 = vld [vmem:[#allocation2] sm:$0x1]
  %v359 = vperm.slane %v357, 0
  %v361 = vadd.f32 %v349, %v359
  %v362 = vadd.f32 %v356, %v359
  %v365 = vrot.slane %v362, 7
  %vm366 = vcmask 1041409
  %v367 = vsel %vm366, %v365, %v361
  %vm369 = vcmask 1024
  %370 = vst.msk [vmem:[%s6] sm:$0x3] %vm369, %v367
  // Predicated region
  $region26: #{digit_image_discriminator_forward.3} parent=0 // pred_check
    _
  $region27: #{digit_image_discriminator_forward.3} parent=0 // pred_check_branch
    %372 = sbr.rel (0) target = $region29
  $region28: #{digit_image_discriminator_forward.3} parent=0 // pred_region
    _
  $region29: #{digit_image_discriminator_forward.3} parent=0 // pred_fallthru
    _
  // Predicated region
  $region30: #{digit_image_discriminator_forward.3} parent=0 // pred_check
    _
  $region31: #{digit_image_discriminator_forward.3} parent=0 // pred_check_branch
    %374 = sbr.rel (0) target = $region33
  $region32: #{digit_image_discriminator_forward.3} parent=0 // pred_region
    _
  $region33: #{digit_image_discriminator_forward.3} parent=0 // pred_fallthru
    _

</llo_original>
